<compile_context>
chip_gen: v5e
topology: v5e:2x2
jax: 0.10.0
libtpu: 0.0.40
codegen_flags: <defaults>
</compile_context>

<pallas_src>
import functools

import jax
import jax.numpy as jnp
from jax.experimental import pallas as pl
from jax.experimental.pallas import tpu as pltpu


# ---------------------------------------------------------------------------
# Kernel
# ---------------------------------------------------------------------------

def _downsample_block_kernel(x_ref,       # (1, Cin, H*W)       activation slab
                             g_ref,       # (H*W, 4*Ho*Wo)      SPD one-hot gather
                             wm_ref,      # (18, Cin, H*W)      dw weights x masks
                             mspd_ref,    # (9, Ho*Wo)          SPD-conv tap masks
                             small_ref,   # (max(Cin,Cout), 3*Cin+4) packed params
                             wspd_ref,    # (Cout, 40*Cout)     merged SPD-conv W
                             o_ref,       # (1, 1, Cout*Ho*Wo)  lane-dense output
                             *, H, W, Cin, Cout):
    f32 = jnp.float32
    Ho, Wo = H // 2, W // 2
    HW, HoWo = H * W, Ho * Wo

    # -- unpack the single packed small-parameter slab (static slices only) ---
    pw1 = small_ref[0:Cin, 0:Cin]                 # pointwise1, BN1 scale folded
    pw2 = small_ref[0:Cout, Cin:2 * Cin]          # pointwise2, BN2 scale folded
    skw = small_ref[0:Cout, 2 * Cin:3 * Cin]      # skip 1x1,  skip-BN scale folded
    c0 = 3 * Cin
    b1 = small_ref[0:Cin, c0:c0 + 1]              # BN1 shift  (Cin, 1)
    b2 = small_ref[0:Cout, c0 + 1:c0 + 2]         # BN2 shift  (Cout, 1)
    bsk = small_ref[0:Cout, c0 + 2:c0 + 3]        # skip BN shift
    bsp = small_ref[0:Cout, c0 + 3:c0 + 4]        # combined SPD-conv bias

    def dw3x3(act, base):
        """Depthwise 3x3, stride 1, pad 1, on the (Cin, H*W) flat layout.

        Boundary masks are pre-folded into wm_ref on the host, so each tap is
        one in-register roll + one multiply-add (no halo scratch, no masking).
        """
        acc = act * wm_ref[base + 4]                         # centre tap
        for t in range(9):
            if t == 4:
                continue
            di, dj = t // 3 - 1, t % 3 - 1
            acc = acc + jnp.roll(act, -(di * W + dj), axis=1) * wm_ref[base + t]
        return acc

    x = x_ref[0].astype(f32)                                 # (Cin, HW)

    # ------------------------------ main branch ------------------------------
    h = jnp.maximum(x, 0.0)                                  # leading ReLU (once)
    h = dw3x3(h, 0)                                          # depthwise 3x3 #1
    h = jnp.dot(pw1, h, preferred_element_type=f32)          # pointwise (+BN1 scale)
    h = jnp.maximum(h + b1, 0.0)                             # BN1 shift + ReLU
    h = dw3x3(h, 9)                                          # depthwise 3x3 #2
    h = jnp.dot(pw2, h, preferred_element_type=f32)          # pointwise (+BN2 scale)
    h = jnp.maximum(h + b2, 0.0)                             # BN2 shift + ReLU (Cout, HW)

    # ------------------------------ skip branch ------------------------------
    s = jnp.dot(skw, x, preferred_element_type=f32) + bsk    # 1x1 conv + BN (Cout, HW)

    # ---- space-to-depth (scale 2) via ONE host-built one-hot gather matmul ---
    g = g_ref[...]
    hs = jnp.dot(h, g, preferred_element_type=f32)           # (Cout, 4*HoWo)
    ss = jnp.dot(s, g, preferred_element_type=f32)           # (Cout, 4*HoWo)

    def to_spd(a):
        # (Cout, 4*HoWo) -> (4*Cout, HoWo), rows ordered p*Cout + c (torch order)
        return jnp.concatenate(
            [a[:, p * HoWo:(p + 1) * HoWo] for p in range(4)], axis=0)

    zm = to_spd(hs)                                          # main  SPD map
    zs = to_spd(ss)                                          # skip  SPD map

    # ---- merged SPDConv epilogue: one (Cout, 40*Cout) @ (40*Cout, HoWo) ------
    blocks = []
    for t in range(9):                                       # main 3x3 im2col taps
        di, dj = t // 3 - 1, t % 3 - 1
        if di == 0 and dj == 0:
            blocks.append(zm)
        else:
            tap = jnp.roll(zm, -(di * Wo + dj), axis=1)
            blocks.append(tap * mspd_ref[t:t + 1, :])        # zero the padding taps
    blocks.append(zs)                                        # skip 1x1 SPD channels
    slab = jnp.concatenate(blocks, axis=0)                   # (40*Cout, HoWo)
    out = jnp.dot(wspd_ref[...], slab, preferred_element_type=f32) + bsp  # (Cout, HoWo)

    # ---- lane-dense store: (Cout, HoWo) -> (1, Cout*HoWo), 512 lanes ---------
    flat = jnp.concatenate([out[c:c + 1, :] for c in range(Cout)], axis=1)
    o_ref[0] = flat.astype(o_ref.dtype)


# ---------------------------------------------------------------------------
# Wrapper
# ---------------------------------------------------------------------------

def downsample_block_forward(x_nchw, kp):
    N, Cin, H, W = x_nchw.shape
    assert H % 2 == 0 and W % 2 == 0
    Cout = kp["wspd"].shape[0]
    Ho, Wo = H // 2, W // 2
    HW, HoWo = H * W, Ho * Wo

    x_flat = x_nchw.reshape(N, Cin, HW)          # free reshape: lane-dense slab

    kernel = functools.partial(_downsample_block_kernel,
                               H=H, W=W, Cin=Cin, Cout=Cout)

    grid_spec = pltpu.PrefetchScalarGridSpec(
        num_scalar_prefetch=0,
        grid=(N,),                               # batch axis -> megacore parallel
        in_specs=[
            pl.BlockSpec((1, Cin, HW), lambda n: (n, 0, 0)),        # x
            pl.BlockSpec(kp["gather"].shape, lambda n: (0, 0)),     # SPD gather
            pl.BlockSpec(kp["wm"].shape, lambda n: (0, 0, 0)),      # dw weights*masks
            pl.BlockSpec(kp["mspd"].shape, lambda n: (0, 0)),       # SPD tap masks
            pl.BlockSpec(kp["small"].shape, lambda n: (0, 0)),      # packed small
            pl.BlockSpec(kp["wspd"].shape, lambda n: (0, 0)),       # merged SPD W
        ],
        out_specs=pl.BlockSpec((1, 1, Cout * HoWo), lambda n: (n, 0, 0)),
    )

    out = pl.pallas_call(
        kernel,
        grid_spec=grid_spec,
        out_shape=jax.ShapeDtypeStruct((N, 1, Cout * HoWo), x_nchw.dtype),
        compiler_params=pltpu.CompilerParams(
            dimension_semantics=("parallel",)),
    )(x_flat, kp["gather"], kp["wm"], kp["mspd"], kp["small"], kp["wspd"])

    # Free reshape back to NCHW (kernel wrote channel-major raster order).
    return out.reshape(N, Cout, Ho, Wo)


# ---------------------------------------------------------------------------
# Host-side constant / parameter preparation (all hoisted out of the kernel)
# ---------------------------------------------------------------------------

def bn_fold(gamma, beta, mean, var, eps=1e-5):
    scale = gamma / jnp.sqrt(var + eps)
    shift = beta - mean * scale
    return scale, shift


def _conv_tap_masks(h, w):
    """(9, h*w) validity mask per 3x3 tap (pad=1), tap order t = (di+1)*3+(dj+1)."""
    hh = jnp.arange(h)
    ww = jnp.arange(w)
    rows = []
    for di in (-1, 0, 1):
        for dj in (-1, 0, 1):
            mh = ((hh + di >= 0) & (hh + di < h)).astype(jnp.float32)
            mw = ((ww + dj >= 0) & (ww + dj < w)).astype(jnp.float32)
            rows.append((mh[:, None] * mw[None, :]).reshape(h * w))
    return jnp.stack(rows, axis=0)


def _spd_gather_matrix(H, W):
    """(H*W, 4*Ho*Wo) one-hot gather; phase order [::2,::2],[1::2,::2],[::2,1::2],[1::2,1::2]."""
    Ho, Wo = H // 2, W // 2
    rh, rw, q = jnp.arange(Ho), jnp.arange(Wo), jnp.arange(H * W)
    blocks = []
    for pr, pc in ((0, 0), (1, 0), (0, 1), (1, 1)):
        src = ((2 * rh + pr)[:, None] * W + (2 * rw + pc)[None, :]).reshape(Ho * Wo)
        blocks.append((q[:, None] == src[None, :]).astype(jnp.float32))
    return jnp.concatenate(blocks, axis=1)


def pack_params(tp, H, W):
    """Fold BN scales into weights, fold boundary masks into depthwise weights,
    reorder/concatenate the SPD-conv weights, and pack all tiny operands into a
    single slab.  Everything here runs once on the host."""
    Cin = tp["pw1"].shape[0]
    Cout = tp["pw2"].shape[0]
    Ho, Wo = H // 2, W // 2

    s1, b1 = bn_fold(*tp["bn1"])
    s2, b2 = bn_fold(*tp["bn2"])
    ssk, bskip = bn_fold(*tp["skip_bn"])

    pw1f = tp["pw1"] * s1[:, None]
    pw2f = tp["pw2"] * s2[:, None]
    skwf = tp["skip_w"] * ssk[:, None]

    # depthwise taps x boundary masks folded into one per-tap constant
    mdw = _conv_tap_masks(H, W)                               # (9, H*W)

    def fold_dw(w_c33):
        wt = w_c33.reshape(-1, 9).T                           # (9, Cin), t = ki*3+kj
        return wt[:, :, None] * mdw[:, None, :]               # (9, Cin, H*W)

    wm = jnp.concatenate([fold_dw(tp["dw1"]), fold_dw(tp["dw2"])], axis=0)

    # merged SPDConv weight: main 3x3 (columns = tap*4*Cout + p*Cout + c) | skip 1x1
    wmain = jnp.transpose(tp["spd_main_w"], (0, 2, 3, 1)).reshape(Cout, 9 * 4 * Cout)
    wspd = jnp.concatenate([wmain, tp["spd_skip_w"]], axis=1)  # (Cout, 40*Cout)
    bspd = tp["spd_main_b"] + tp["spd_skip_b"]

    # single packed slab for all small operands (one DMA, one VMEM tile)
    Cm = max(Cin, Cout)
    small = jnp.zeros((Cm, 3 * Cin + 4), jnp.float32)
    small = small.at[:Cin, 0:Cin].set(pw1f)
    small = small.at[:Cout, Cin:2 * Cin].set(pw2f)
    small = small.at[:Cout, 2 * Cin:3 * Cin].set(skwf)
    small = small.at[:Cin, 3 * Cin].set(b1)
    small = small.at[:Cout, 3 * Cin + 1].set(b2)
    small = small.at[:Cout, 3 * Cin + 2].set(bskip)
    small = small.at[:Cout, 3 * Cin + 3].set(bspd)

    return {
        "gather": _spd_gather_matrix(H, W),     # (HW, 4*HoWo)
        "wm": wm,                               # (18, Cin, HW)
        "mspd": _conv_tap_masks(Ho, Wo),        # (9, HoWo)
        "small": small,                         # (max(Cin,Cout), 3*Cin+4)
        "wspd": wspd,                           # (Cout, 40*Cout)
    }


# ---------------------------------------------------------------------------
# Deterministic synthetic parameters in PyTorch layouts (no checkpoint)
# ---------------------------------------------------------------------------

def init_torch_params(key, cin, cout, dtype=jnp.float32):
    ks = jax.random.split(key, 12)

    def nrm(k, shape, s=0.1):
        return (s * jax.random.normal(k, shape)).astype(dtype)

    def bn(k, c):
        k1, k2, k3, k4 = jax.random.split(k, 4)
        gamma = 1.0 + nrm(k1, (c,))
        beta = nrm(k2, (c,))
        mean = nrm(k3, (c,))
        var = jax.random.uniform(k4, (c,), minval=0.5, maxval=1.5).astype(dtype)
        return (gamma, beta, mean, var)

    return {
        "dw1": nrm(ks[0], (cin, 3, 3)),                 # depthwise (C,1,3,3) squeezed
        "pw1": nrm(ks[1], (cin, cin)),                  # pointwise (C,C,1,1) squeezed
        "bn1": bn(ks[2], cin),
        "dw2": nrm(ks[3], (cin, 3, 3)),
        "pw2": nrm(ks[4], (cout, cin)),
        "bn2": bn(ks[5], cout),
        "spd_main_w": nrm(ks[6], (cout, 4 * cout, 3, 3)),
        "spd_main_b": nrm(ks[7], (cout,)),
        "skip_w": nrm(ks[8], (cout, cin)),              # 1x1, bias=False
        "skip_bn": bn(ks[9], cout),
        "spd_skip_w": nrm(ks[10], (cout, 4 * cout)),    # 1x1
        "spd_skip_b": nrm(ks[11], (cout,)),
    }


if __name__ == "__main__":
    key = jax.random.PRNGKey(0)
    kx, kp = jax.random.split(key)

    N, C_IN, C_OUT, H, W = 2, 4, 8, 16, 16
    x = jax.random.normal(kx, (N, C_IN, H, W), dtype=jnp.float32)

    torch_params = init_torch_params(kp, C_IN, C_OUT)
    packed = pack_params(torch_params, H, W)

    fwd = jax.jit(downsample_block_forward)
    out = jax.block_until_ready(fwd(x, packed))

    assert out.shape == (N, C_OUT, H // 2, W // 2), out.shape
    assert bool(jnp.all(jnp.isfinite(out)))
    print("KERNEL_OK")
</pallas_src>

<mosaic_0001>
module attributes {stable_mosaic.version = 11 : i64} {
  func.func @_downsample_block_kernel(%arg0: i32, %arg1: memref<1x4x256xf32, #tpu.memory_space<vmem>>, %arg2: memref<256x256xf32, #tpu.memory_space<vmem>>, %arg3: memref<18x4x256xf32, #tpu.memory_space<vmem>>, %arg4: memref<9x64xf32, #tpu.memory_space<vmem>>, %arg5: memref<8x16xf32, #tpu.memory_space<vmem>>, %arg6: memref<8x320xf32, #tpu.memory_space<vmem>>, %arg7: memref<1x1x512xf32, #tpu.memory_space<vmem>>) attributes {dimension_semantics = [#tpu.dimension_semantics<parallel>], iteration_bounds = array<i64: 2>, scalar_prefetch = 0 : i64, scratch_operands = 0 : i64, tpu.core_type = #tpu.core_type<tc>, window_params = [{transform_indices = @transform_0, window_bounds = array<i64: 1, 4, 256>}, {pipeline_mode = #tpu.pipeline_mode<synchronous>, transform_indices = @transform_1, window_bounds = array<i64: 256, 256>}, {pipeline_mode = #tpu.pipeline_mode<synchronous>, transform_indices = @transform_2, window_bounds = array<i64: 18, 4, 256>}, {pipeline_mode = #tpu.pipeline_mode<synchronous>, transform_indices = @transform_3, window_bounds = array<i64: 9, 64>}, {pipeline_mode = #tpu.pipeline_mode<synchronous>, transform_indices = @transform_4, window_bounds = array<i64: 8, 16>}, {pipeline_mode = #tpu.pipeline_mode<synchronous>, transform_indices = @transform_5, window_bounds = array<i64: 8, 320>}, {transform_indices = @transform_6, window_bounds = array<i64: 1, 1, 512>}]} {
    %c0 = arith.constant 0 : index
    %c0_0 = arith.constant 0 : index
    %0 = vector.load %arg5[%c0, %c0_0] : memref<8x16xf32, #tpu.memory_space<vmem>>, vector<4x4xf32>
    %c0_1 = arith.constant 0 : index
    %c4 = arith.constant 4 : index
    %1 = vector.load %arg5[%c0_1, %c4] : memref<8x16xf32, #tpu.memory_space<vmem>>, vector<8x4xf32>
    %c0_2 = arith.constant 0 : index
    %c8 = arith.constant 8 : index
    %2 = vector.load %arg5[%c0_2, %c8] : memref<8x16xf32, #tpu.memory_space<vmem>>, vector<8x4xf32>
    %c0_3 = arith.constant 0 : index
    %c12 = arith.constant 12 : index
    %3 = vector.load %arg5[%c0_3, %c12] : memref<8x16xf32, #tpu.memory_space<vmem>>, vector<4x1xf32>
    %c0_4 = arith.constant 0 : index
    %c13 = arith.constant 13 : index
    %4 = vector.load %arg5[%c0_4, %c13] : memref<8x16xf32, #tpu.memory_space<vmem>>, vector<8x1xf32>
    %c0_5 = arith.constant 0 : index
    %c14 = arith.constant 14 : index
    %5 = vector.load %arg5[%c0_5, %c14] : memref<8x16xf32, #tpu.memory_space<vmem>>, vector<8x1xf32>
    %c0_6 = arith.constant 0 : index
    %c15 = arith.constant 15 : index
    %6 = vector.load %arg5[%c0_6, %c15] : memref<8x16xf32, #tpu.memory_space<vmem>>, vector<8x1xf32>
    %c0_7 = arith.constant 0 : index
    %c0_8 = arith.constant 0 : index
    %c0_9 = arith.constant 0 : index
    %7 = vector.load %arg1[%c0_7, %c0_8, %c0_9] : memref<1x4x256xf32, #tpu.memory_space<vmem>>, vector<1x4x256xf32>
    %8 = vector.shape_cast %7 : vector<1x4x256xf32> to vector<4x256xf32>
    %cst = arith.constant 0.000000e+00 : f32
    %9 = vector.broadcast %cst : f32 to vector<4x256xf32>
    %10 = arith.maximumf %8, %9 : vector<4x256xf32>
    %c4_10 = arith.constant 4 : index
    %c0_11 = arith.constant 0 : index
    %c0_12 = arith.constant 0 : index
    %11 = vector.load %arg3[%c4_10, %c0_11, %c0_12] : memref<18x4x256xf32, #tpu.memory_space<vmem>>, vector<1x4x256xf32>
    %12 = vector.shape_cast %11 : vector<1x4x256xf32> to vector<4x256xf32>
    %13 = arith.mulf %10, %12 : vector<4x256xf32>
    %14 = vector.extract_strided_slice %10 {offsets = [0, 239], sizes = [4, 17], strides = [1, 1]} : vector<4x256xf32> to vector<4x17xf32>
    %15 = vector.extract_strided_slice %10 {offsets = [0, 0], sizes = [4, 239], strides = [1, 1]} : vector<4x256xf32> to vector<4x239xf32>
    %16 = tpu.concatenate %14, %15 in 1 : vector<4x17xf32>, vector<4x239xf32> -> vector<4x256xf32>
    %c0_13 = arith.constant 0 : index
    %c0_14 = arith.constant 0 : index
    %c0_15 = arith.constant 0 : index
    %17 = vector.load %arg3[%c0_13, %c0_14, %c0_15] : memref<18x4x256xf32, #tpu.memory_space<vmem>>, vector<1x4x256xf32>
    %18 = vector.shape_cast %17 : vector<1x4x256xf32> to vector<4x256xf32>
    %19 = arith.mulf %16, %18 : vector<4x256xf32>
    %20 = arith.addf %13, %19 : vector<4x256xf32>
    %21 = vector.extract_strided_slice %10 {offsets = [0, 240], sizes = [4, 16], strides = [1, 1]} : vector<4x256xf32> to vector<4x16xf32>
    %22 = vector.extract_strided_slice %10 {offsets = [0, 0], sizes = [4, 240], strides = [1, 1]} : vector<4x256xf32> to vector<4x240xf32>
    %23 = tpu.concatenate %21, %22 in 1 : vector<4x16xf32>, vector<4x240xf32> -> vector<4x256xf32>
    %c1 = arith.constant 1 : index
    %c0_16 = arith.constant 0 : index
    %c0_17 = arith.constant 0 : index
    %24 = vector.load %arg3[%c1, %c0_16, %c0_17] : memref<18x4x256xf32, #tpu.memory_space<vmem>>, vector<1x4x256xf32>
    %25 = vector.shape_cast %24 : vector<1x4x256xf32> to vector<4x256xf32>
    %26 = arith.mulf %23, %25 : vector<4x256xf32>
    %27 = arith.addf %20, %26 : vector<4x256xf32>
    %28 = vector.extract_strided_slice %10 {offsets = [0, 241], sizes = [4, 15], strides = [1, 1]} : vector<4x256xf32> to vector<4x15xf32>
    %29 = vector.extract_strided_slice %10 {offsets = [0, 0], sizes = [4, 241], strides = [1, 1]} : vector<4x256xf32> to vector<4x241xf32>
    %30 = tpu.concatenate %28, %29 in 1 : vector<4x15xf32>, vector<4x241xf32> -> vector<4x256xf32>
    %c2 = arith.constant 2 : index
    %c0_18 = arith.constant 0 : index
    %c0_19 = arith.constant 0 : index
    %31 = vector.load %arg3[%c2, %c0_18, %c0_19] : memref<18x4x256xf32, #tpu.memory_space<vmem>>, vector<1x4x256xf32>
    %32 = vector.shape_cast %31 : vector<1x4x256xf32> to vector<4x256xf32>
    %33 = arith.mulf %30, %32 : vector<4x256xf32>
    %34 = arith.addf %27, %33 : vector<4x256xf32>
    %35 = vector.extract_strided_slice %10 {offsets = [0, 255], sizes = [4, 1], strides = [1, 1]} : vector<4x256xf32> to vector<4x1xf32>
    %36 = vector.extract_strided_slice %10 {offsets = [0, 0], sizes = [4, 255], strides = [1, 1]} : vector<4x256xf32> to vector<4x255xf32>
    %37 = tpu.concatenate %35, %36 in 1 : vector<4x1xf32>, vector<4x255xf32> -> vector<4x256xf32>
    %c3 = arith.constant 3 : index
    %c0_20 = arith.constant 0 : index
    %c0_21 = arith.constant 0 : index
    %38 = vector.load %arg3[%c3, %c0_20, %c0_21] : memref<18x4x256xf32, #tpu.memory_space<vmem>>, vector<1x4x256xf32>
    %39 = vector.shape_cast %38 : vector<1x4x256xf32> to vector<4x256xf32>
    %40 = arith.mulf %37, %39 : vector<4x256xf32>
    %41 = arith.addf %34, %40 : vector<4x256xf32>
    %42 = vector.extract_strided_slice %10 {offsets = [0, 1], sizes = [4, 255], strides = [1, 1]} : vector<4x256xf32> to vector<4x255xf32>
    %43 = vector.extract_strided_slice %10 {offsets = [0, 0], sizes = [4, 1], strides = [1, 1]} : vector<4x256xf32> to vector<4x1xf32>
    %44 = tpu.concatenate %42, %43 in 1 : vector<4x255xf32>, vector<4x1xf32> -> vector<4x256xf32>
    %c5 = arith.constant 5 : index
    %c0_22 = arith.constant 0 : index
    %c0_23 = arith.constant 0 : index
    %45 = vector.load %arg3[%c5, %c0_22, %c0_23] : memref<18x4x256xf32, #tpu.memory_space<vmem>>, vector<1x4x256xf32>
    %46 = vector.shape_cast %45 : vector<1x4x256xf32> to vector<4x256xf32>
    %47 = arith.mulf %44, %46 : vector<4x256xf32>
    %48 = arith.addf %41, %47 : vector<4x256xf32>
    %49 = vector.extract_strided_slice %10 {offsets = [0, 15], sizes = [4, 241], strides = [1, 1]} : vector<4x256xf32> to vector<4x241xf32>
    %50 = vector.extract_strided_slice %10 {offsets = [0, 0], sizes = [4, 15], strides = [1, 1]} : vector<4x256xf32> to vector<4x15xf32>
    %51 = tpu.concatenate %49, %50 in 1 : vector<4x241xf32>, vector<4x15xf32> -> vector<4x256xf32>
    %c6 = arith.constant 6 : index
    %c0_24 = arith.constant 0 : index
    %c0_25 = arith.constant 0 : index
    %52 = vector.load %arg3[%c6, %c0_24, %c0_25] : memref<18x4x256xf32, #tpu.memory_space<vmem>>, vector<1x4x256xf32>
    %53 = vector.shape_cast %52 : vector<1x4x256xf32> to vector<4x256xf32>
    %54 = arith.mulf %51, %53 : vector<4x256xf32>
    %55 = arith.addf %48, %54 : vector<4x256xf32>
    %56 = vector.extract_strided_slice %10 {offsets = [0, 16], sizes = [4, 240], strides = [1, 1]} : vector<4x256xf32> to vector<4x240xf32>
    %57 = vector.extract_strided_slice %10 {offsets = [0, 0], sizes = [4, 16], strides = [1, 1]} : vector<4x256xf32> to vector<4x16xf32>
    %58 = tpu.concatenate %56, %57 in 1 : vector<4x240xf32>, vector<4x16xf32> -> vector<4x256xf32>
    %c7 = arith.constant 7 : index
    %c0_26 = arith.constant 0 : index
    %c0_27 = arith.constant 0 : index
    %59 = vector.load %arg3[%c7, %c0_26, %c0_27] : memref<18x4x256xf32, #tpu.memory_space<vmem>>, vector<1x4x256xf32>
    %60 = vector.shape_cast %59 : vector<1x4x256xf32> to vector<4x256xf32>
    %61 = arith.mulf %58, %60 : vector<4x256xf32>
    %62 = arith.addf %55, %61 : vector<4x256xf32>
    %63 = vector.extract_strided_slice %10 {offsets = [0, 17], sizes = [4, 239], strides = [1, 1]} : vector<4x256xf32> to vector<4x239xf32>
    %64 = vector.extract_strided_slice %10 {offsets = [0, 0], sizes = [4, 17], strides = [1, 1]} : vector<4x256xf32> to vector<4x17xf32>
    %65 = tpu.concatenate %63, %64 in 1 : vector<4x239xf32>, vector<4x17xf32> -> vector<4x256xf32>
    %c8_28 = arith.constant 8 : index
    %c0_29 = arith.constant 0 : index
    %c0_30 = arith.constant 0 : index
    %66 = vector.load %arg3[%c8_28, %c0_29, %c0_30] : memref<18x4x256xf32, #tpu.memory_space<vmem>>, vector<1x4x256xf32>
    %67 = vector.shape_cast %66 : vector<1x4x256xf32> to vector<4x256xf32>
    %68 = arith.mulf %65, %67 : vector<4x256xf32>
    %69 = arith.addf %62, %68 : vector<4x256xf32>
    %cst_31 = arith.constant dense<0.000000e+00> : vector<4x256xf32>
    %70 = tpu.matmul %0, %69, %cst_31 {dimension_numbers = #tpu.dot_dimension_numbers<[1], [0], [0], [1], [0, 0, 1, 1], [], []>} : vector<4x4xf32>, vector<4x256xf32>, vector<4x256xf32> -> vector<4x256xf32>
    %71 = vector.broadcast %3 : vector<4x1xf32> to vector<4x256xf32>
    %72 = arith.addf %70, %71 : vector<4x256xf32>
    %cst_32 = arith.constant 0.000000e+00 : f32
    %73 = vector.broadcast %cst_32 : f32 to vector<4x256xf32>
    %74 = arith.maximumf %72, %73 : vector<4x256xf32>
    %c13_33 = arith.constant 13 : index
    %c0_34 = arith.constant 0 : index
    %c0_35 = arith.constant 0 : index
    %75 = vector.load %arg3[%c13_33, %c0_34, %c0_35] : memref<18x4x256xf32, #tpu.memory_space<vmem>>, vector<1x4x256xf32>
    %76 = vector.shape_cast %75 : vector<1x4x256xf32> to vector<4x256xf32>
    %77 = arith.mulf %74, %76 : vector<4x256xf32>
    %78 = vector.extract_strided_slice %74 {offsets = [0, 239], sizes = [4, 17], strides = [1, 1]} : vector<4x256xf32> to vector<4x17xf32>
    %79 = vector.extract_strided_slice %74 {offsets = [0, 0], sizes = [4, 239], strides = [1, 1]} : vector<4x256xf32> to vector<4x239xf32>
    %80 = tpu.concatenate %78, %79 in 1 : vector<4x17xf32>, vector<4x239xf32> -> vector<4x256xf32>
    %c9 = arith.constant 9 : index
    %c0_36 = arith.constant 0 : index
    %c0_37 = arith.constant 0 : index
    %81 = vector.load %arg3[%c9, %c0_36, %c0_37] : memref<18x4x256xf32, #tpu.memory_space<vmem>>, vector<1x4x256xf32>
    %82 = vector.shape_cast %81 : vector<1x4x256xf32> to vector<4x256xf32>
    %83 = arith.mulf %80, %82 : vector<4x256xf32>
    %84 = arith.addf %77, %83 : vector<4x256xf32>
    %85 = vector.extract_strided_slice %74 {offsets = [0, 240], sizes = [4, 16], strides = [1, 1]} : vector<4x256xf32> to vector<4x16xf32>
    %86 = vector.extract_strided_slice %74 {offsets = [0, 0], sizes = [4, 240], strides = [1, 1]} : vector<4x256xf32> to vector<4x240xf32>
    %87 = tpu.concatenate %85, %86 in 1 : vector<4x16xf32>, vector<4x240xf32> -> vector<4x256xf32>
    %c10 = arith.constant 10 : index
    %c0_38 = arith.constant 0 : index
    %c0_39 = arith.constant 0 : index
    %88 = vector.load %arg3[%c10, %c0_38, %c0_39] : memref<18x4x256xf32, #tpu.memory_space<vmem>>, vector<1x4x256xf32>
    %89 = vector.shape_cast %88 : vector<1x4x256xf32> to vector<4x256xf32>
    %90 = arith.mulf %87, %89 : vector<4x256xf32>
    %91 = arith.addf %84, %90 : vector<4x256xf32>
    %92 = vector.extract_strided_slice %74 {offsets = [0, 241], sizes = [4, 15], strides = [1, 1]} : vector<4x256xf32> to vector<4x15xf32>
    %93 = vector.extract_strided_slice %74 {offsets = [0, 0], sizes = [4, 241], strides = [1, 1]} : vector<4x256xf32> to vector<4x241xf32>
    %94 = tpu.concatenate %92, %93 in 1 : vector<4x15xf32>, vector<4x241xf32> -> vector<4x256xf32>
    %c11 = arith.constant 11 : index
    %c0_40 = arith.constant 0 : index
    %c0_41 = arith.constant 0 : index
    %95 = vector.load %arg3[%c11, %c0_40, %c0_41] : memref<18x4x256xf32, #tpu.memory_space<vmem>>, vector<1x4x256xf32>
    %96 = vector.shape_cast %95 : vector<1x4x256xf32> to vector<4x256xf32>
    %97 = arith.mulf %94, %96 : vector<4x256xf32>
    %98 = arith.addf %91, %97 : vector<4x256xf32>
    %99 = vector.extract_strided_slice %74 {offsets = [0, 255], sizes = [4, 1], strides = [1, 1]} : vector<4x256xf32> to vector<4x1xf32>
    %100 = vector.extract_strided_slice %74 {offsets = [0, 0], sizes = [4, 255], strides = [1, 1]} : vector<4x256xf32> to vector<4x255xf32>
    %101 = tpu.concatenate %99, %100 in 1 : vector<4x1xf32>, vector<4x255xf32> -> vector<4x256xf32>
    %c12_42 = arith.constant 12 : index
    %c0_43 = arith.constant 0 : index
    %c0_44 = arith.constant 0 : index
    %102 = vector.load %arg3[%c12_42, %c0_43, %c0_44] : memref<18x4x256xf32, #tpu.memory_space<vmem>>, vector<1x4x256xf32>
    %103 = vector.shape_cast %102 : vector<1x4x256xf32> to vector<4x256xf32>
    %104 = arith.mulf %101, %103 : vector<4x256xf32>
    %105 = arith.addf %98, %104 : vector<4x256xf32>
    %106 = vector.extract_strided_slice %74 {offsets = [0, 1], sizes = [4, 255], strides = [1, 1]} : vector<4x256xf32> to vector<4x255xf32>
    %107 = vector.extract_strided_slice %74 {offsets = [0, 0], sizes = [4, 1], strides = [1, 1]} : vector<4x256xf32> to vector<4x1xf32>
    %108 = tpu.concatenate %106, %107 in 1 : vector<4x255xf32>, vector<4x1xf32> -> vector<4x256xf32>
    %c14_45 = arith.constant 14 : index
    %c0_46 = arith.constant 0 : index
    %c0_47 = arith.constant 0 : index
    %109 = vector.load %arg3[%c14_45, %c0_46, %c0_47] : memref<18x4x256xf32, #tpu.memory_space<vmem>>, vector<1x4x256xf32>
    %110 = vector.shape_cast %109 : vector<1x4x256xf32> to vector<4x256xf32>
    %111 = arith.mulf %108, %110 : vector<4x256xf32>
    %112 = arith.addf %105, %111 : vector<4x256xf32>
    %113 = vector.extract_strided_slice %74 {offsets = [0, 15], sizes = [4, 241], strides = [1, 1]} : vector<4x256xf32> to vector<4x241xf32>
    %114 = vector.extract_strided_slice %74 {offsets = [0, 0], sizes = [4, 15], strides = [1, 1]} : vector<4x256xf32> to vector<4x15xf32>
    %115 = tpu.concatenate %113, %114 in 1 : vector<4x241xf32>, vector<4x15xf32> -> vector<4x256xf32>
    %c15_48 = arith.constant 15 : index
    %c0_49 = arith.constant 0 : index
    %c0_50 = arith.constant 0 : index
    %116 = vector.load %arg3[%c15_48, %c0_49, %c0_50] : memref<18x4x256xf32, #tpu.memory_space<vmem>>, vector<1x4x256xf32>
    %117 = vector.shape_cast %116 : vector<1x4x256xf32> to vector<4x256xf32>
    %118 = arith.mulf %115, %117 : vector<4x256xf32>
    %119 = arith.addf %112, %118 : vector<4x256xf32>
    %120 = vector.extract_strided_slice %74 {offsets = [0, 16], sizes = [4, 240], strides = [1, 1]} : vector<4x256xf32> to vector<4x240xf32>
    %121 = vector.extract_strided_slice %74 {offsets = [0, 0], sizes = [4, 16], strides = [1, 1]} : vector<4x256xf32> to vector<4x16xf32>
    %122 = tpu.concatenate %120, %121 in 1 : vector<4x240xf32>, vector<4x16xf32> -> vector<4x256xf32>
    %c16 = arith.constant 16 : index
    %c0_51 = arith.constant 0 : index
    %c0_52 = arith.constant 0 : index
    %123 = vector.load %arg3[%c16, %c0_51, %c0_52] : memref<18x4x256xf32, #tpu.memory_space<vmem>>, vector<1x4x256xf32>
    %124 = vector.shape_cast %123 : vector<1x4x256xf32> to vector<4x256xf32>
    %125 = arith.mulf %122, %124 : vector<4x256xf32>
    %126 = arith.addf %119, %125 : vector<4x256xf32>
    %127 = vector.extract_strided_slice %74 {offsets = [0, 17], sizes = [4, 239], strides = [1, 1]} : vector<4x256xf32> to vector<4x239xf32>
    %128 = vector.extract_strided_slice %74 {offsets = [0, 0], sizes = [4, 17], strides = [1, 1]} : vector<4x256xf32> to vector<4x17xf32>
    %129 = tpu.concatenate %127, %128 in 1 : vector<4x239xf32>, vector<4x17xf32> -> vector<4x256xf32>
    %c17 = arith.constant 17 : index
    %c0_53 = arith.constant 0 : index
    %c0_54 = arith.constant 0 : index
    %130 = vector.load %arg3[%c17, %c0_53, %c0_54] : memref<18x4x256xf32, #tpu.memory_space<vmem>>, vector<1x4x256xf32>
    %131 = vector.shape_cast %130 : vector<1x4x256xf32> to vector<4x256xf32>
    %132 = arith.mulf %129, %131 : vector<4x256xf32>
    %133 = arith.addf %126, %132 : vector<4x256xf32>
    %cst_55 = arith.constant dense<0.000000e+00> : vector<8x256xf32>
    %134 = tpu.matmul %1, %133, %cst_55 {dimension_numbers = #tpu.dot_dimension_numbers<[1], [0], [0], [1], [0, 0, 1, 1], [], []>} : vector<8x4xf32>, vector<4x256xf32>, vector<8x256xf32> -> vector<8x256xf32>
    %135 = vector.broadcast %4 : vector<8x1xf32> to vector<8x256xf32>
    %136 = arith.addf %134, %135 : vector<8x256xf32>
    %cst_56 = arith.constant 0.000000e+00 : f32
    %137 = vector.broadcast %cst_56 : f32 to vector<8x256xf32>
    %138 = arith.maximumf %136, %137 : vector<8x256xf32>
    %cst_57 = arith.constant dense<0.000000e+00> : vector<8x256xf32>
    %139 = tpu.matmul %2, %8, %cst_57 {dimension_numbers = #tpu.dot_dimension_numbers<[1], [0], [0], [1], [0, 0, 1, 1], [], []>} : vector<8x4xf32>, vector<4x256xf32>, vector<8x256xf32> -> vector<8x256xf32>
    %140 = vector.broadcast %5 : vector<8x1xf32> to vector<8x256xf32>
    %141 = arith.addf %139, %140 : vector<8x256xf32>
    %c0_58 = arith.constant 0 : index
    %c0_59 = arith.constant 0 : index
    %142 = vector.load %arg2[%c0_58, %c0_59] : memref<256x256xf32, #tpu.memory_space<vmem>>, vector<256x256xf32>
    %cst_60 = arith.constant dense<0.000000e+00> : vector<8x256xf32>
    %143 = tpu.matmul %138, %142, %cst_60 {dimension_numbers = #tpu.dot_dimension_numbers<[1], [0], [0], [1], [0, 0, 1, 1], [], []>} : vector<8x256xf32>, vector<256x256xf32>, vector<8x256xf32> -> vector<8x256xf32>
    %cst_61 = arith.constant dense<0.000000e+00> : vector<8x256xf32>
    %144 = tpu.matmul %141, %142, %cst_61 {dimension_numbers = #tpu.dot_dimension_numbers<[1], [0], [0], [1], [0, 0, 1, 1], [], []>} : vector<8x256xf32>, vector<256x256xf32>, vector<8x256xf32> -> vector<8x256xf32>
    %145 = vector.extract_strided_slice %143 {offsets = [0, 0], sizes = [8, 64], strides = [1, 1]} : vector<8x256xf32> to vector<8x64xf32>
    %146 = vector.extract_strided_slice %143 {offsets = [0, 64], sizes = [8, 64], strides = [1, 1]} : vector<8x256xf32> to vector<8x64xf32>
    %147 = vector.extract_strided_slice %143 {offsets = [0, 128], sizes = [8, 64], strides = [1, 1]} : vector<8x256xf32> to vector<8x64xf32>
    %148 = vector.extract_strided_slice %143 {offsets = [0, 192], sizes = [8, 64], strides = [1, 1]} : vector<8x256xf32> to vector<8x64xf32>
    %149 = tpu.concatenate %145, %146, %147, %148 in 0 : vector<8x64xf32>, vector<8x64xf32>, vector<8x64xf32>, vector<8x64xf32> -> vector<32x64xf32>
    %150 = vector.extract_strided_slice %144 {offsets = [0, 0], sizes = [8, 64], strides = [1, 1]} : vector<8x256xf32> to vector<8x64xf32>
    %151 = vector.extract_strided_slice %144 {offsets = [0, 64], sizes = [8, 64], strides = [1, 1]} : vector<8x256xf32> to vector<8x64xf32>
    %152 = vector.extract_strided_slice %144 {offsets = [0, 128], sizes = [8, 64], strides = [1, 1]} : vector<8x256xf32> to vector<8x64xf32>
    %153 = vector.extract_strided_slice %144 {offsets = [0, 192], sizes = [8, 64], strides = [1, 1]} : vector<8x256xf32> to vector<8x64xf32>
    %154 = tpu.concatenate %150, %151, %152, %153 in 0 : vector<8x64xf32>, vector<8x64xf32>, vector<8x64xf32>, vector<8x64xf32> -> vector<32x64xf32>
    %155 = vector.extract_strided_slice %149 {offsets = [0, 55], sizes = [32, 9], strides = [1, 1]} : vector<32x64xf32> to vector<32x9xf32>
    %156 = vector.extract_strided_slice %149 {offsets = [0, 0], sizes = [32, 55], strides = [1, 1]} : vector<32x64xf32> to vector<32x55xf32>
    %157 = tpu.concatenate %155, %156 in 1 : vector<32x9xf32>, vector<32x55xf32> -> vector<32x64xf32>
    %c0_62 = arith.constant 0 : index
    %c0_63 = arith.constant 0 : index
    %158 = vector.load %arg4[%c0_62, %c0_63] : memref<9x64xf32, #tpu.memory_space<vmem>>, vector<1x64xf32>
    %159 = vector.broadcast %158 : vector<1x64xf32> to vector<32x64xf32>
    %160 = arith.mulf %157, %159 : vector<32x64xf32>
    %161 = vector.extract_strided_slice %149 {offsets = [0, 56], sizes = [32, 8], strides = [1, 1]} : vector<32x64xf32> to vector<32x8xf32>
    %162 = vector.extract_strided_slice %149 {offsets = [0, 0], sizes = [32, 56], strides = [1, 1]} : vector<32x64xf32> to vector<32x56xf32>
    %163 = tpu.concatenate %161, %162 in 1 : vector<32x8xf32>, vector<32x56xf32> -> vector<32x64xf32>
    %c1_64 = arith.constant 1 : index
    %c0_65 = arith.constant 0 : index
    %164 = vector.load %arg4[%c1_64, %c0_65] : memref<9x64xf32, #tpu.memory_space<vmem>>, vector<1x64xf32>
    %165 = vector.broadcast %164 : vector<1x64xf32> to vector<32x64xf32>
    %166 = arith.mulf %163, %165 : vector<32x64xf32>
    %167 = vector.extract_strided_slice %149 {offsets = [0, 57], sizes = [32, 7], strides = [1, 1]} : vector<32x64xf32> to vector<32x7xf32>
    %168 = vector.extract_strided_slice %149 {offsets = [0, 0], sizes = [32, 57], strides = [1, 1]} : vector<32x64xf32> to vector<32x57xf32>
    %169 = tpu.concatenate %167, %168 in 1 : vector<32x7xf32>, vector<32x57xf32> -> vector<32x64xf32>
    %c2_66 = arith.constant 2 : index
    %c0_67 = arith.constant 0 : index
    %170 = vector.load %arg4[%c2_66, %c0_67] : memref<9x64xf32, #tpu.memory_space<vmem>>, vector<1x64xf32>
    %171 = vector.broadcast %170 : vector<1x64xf32> to vector<32x64xf32>
    %172 = arith.mulf %169, %171 : vector<32x64xf32>
    %173 = vector.extract_strided_slice %149 {offsets = [0, 63], sizes = [32, 1], strides = [1, 1]} : vector<32x64xf32> to vector<32x1xf32>
    %174 = vector.extract_strided_slice %149 {offsets = [0, 0], sizes = [32, 63], strides = [1, 1]} : vector<32x64xf32> to vector<32x63xf32>
    %175 = tpu.concatenate %173, %174 in 1 : vector<32x1xf32>, vector<32x63xf32> -> vector<32x64xf32>
    %c3_68 = arith.constant 3 : index
    %c0_69 = arith.constant 0 : index
    %176 = vector.load %arg4[%c3_68, %c0_69] : memref<9x64xf32, #tpu.memory_space<vmem>>, vector<1x64xf32>
    %177 = vector.broadcast %176 : vector<1x64xf32> to vector<32x64xf32>
    %178 = arith.mulf %175, %177 : vector<32x64xf32>
    %179 = vector.extract_strided_slice %149 {offsets = [0, 1], sizes = [32, 63], strides = [1, 1]} : vector<32x64xf32> to vector<32x63xf32>
    %180 = vector.extract_strided_slice %149 {offsets = [0, 0], sizes = [32, 1], strides = [1, 1]} : vector<32x64xf32> to vector<32x1xf32>
    %181 = tpu.concatenate %179, %180 in 1 : vector<32x63xf32>, vector<32x1xf32> -> vector<32x64xf32>
    %c5_70 = arith.constant 5 : index
    %c0_71 = arith.constant 0 : index
    %182 = vector.load %arg4[%c5_70, %c0_71] : memref<9x64xf32, #tpu.memory_space<vmem>>, vector<1x64xf32>
    %183 = vector.broadcast %182 : vector<1x64xf32> to vector<32x64xf32>
    %184 = arith.mulf %181, %183 : vector<32x64xf32>
    %185 = vector.extract_strided_slice %149 {offsets = [0, 7], sizes = [32, 57], strides = [1, 1]} : vector<32x64xf32> to vector<32x57xf32>
    %186 = vector.extract_strided_slice %149 {offsets = [0, 0], sizes = [32, 7], strides = [1, 1]} : vector<32x64xf32> to vector<32x7xf32>
    %187 = tpu.concatenate %185, %186 in 1 : vector<32x57xf32>, vector<32x7xf32> -> vector<32x64xf32>
    %c6_72 = arith.constant 6 : index
    %c0_73 = arith.constant 0 : index
    %188 = vector.load %arg4[%c6_72, %c0_73] : memref<9x64xf32, #tpu.memory_space<vmem>>, vector<1x64xf32>
    %189 = vector.broadcast %188 : vector<1x64xf32> to vector<32x64xf32>
    %190 = arith.mulf %187, %189 : vector<32x64xf32>
    %191 = vector.extract_strided_slice %149 {offsets = [0, 8], sizes = [32, 56], strides = [1, 1]} : vector<32x64xf32> to vector<32x56xf32>
    %192 = vector.extract_strided_slice %149 {offsets = [0, 0], sizes = [32, 8], strides = [1, 1]} : vector<32x64xf32> to vector<32x8xf32>
    %193 = tpu.concatenate %191, %192 in 1 : vector<32x56xf32>, vector<32x8xf32> -> vector<32x64xf32>
    %c7_74 = arith.constant 7 : index
    %c0_75 = arith.constant 0 : index
    %194 = vector.load %arg4[%c7_74, %c0_75] : memref<9x64xf32, #tpu.memory_space<vmem>>, vector<1x64xf32>
    %195 = vector.broadcast %194 : vector<1x64xf32> to vector<32x64xf32>
    %196 = arith.mulf %193, %195 : vector<32x64xf32>
    %197 = vector.extract_strided_slice %149 {offsets = [0, 9], sizes = [32, 55], strides = [1, 1]} : vector<32x64xf32> to vector<32x55xf32>
    %198 = vector.extract_strided_slice %149 {offsets = [0, 0], sizes = [32, 9], strides = [1, 1]} : vector<32x64xf32> to vector<32x9xf32>
    %199 = tpu.concatenate %197, %198 in 1 : vector<32x55xf32>, vector<32x9xf32> -> vector<32x64xf32>
    %c8_76 = arith.constant 8 : index
    %c0_77 = arith.constant 0 : index
    %200 = vector.load %arg4[%c8_76, %c0_77] : memref<9x64xf32, #tpu.memory_space<vmem>>, vector<1x64xf32>
    %201 = vector.broadcast %200 : vector<1x64xf32> to vector<32x64xf32>
    %202 = arith.mulf %199, %201 : vector<32x64xf32>
    %203 = tpu.concatenate %160, %166, %172, %178, %149, %184, %190, %196, %202, %154 in 0 : vector<32x64xf32>, vector<32x64xf32>, vector<32x64xf32>, vector<32x64xf32>, vector<32x64xf32>, vector<32x64xf32>, vector<32x64xf32>, vector<32x64xf32>, vector<32x64xf32>, vector<32x64xf32> -> vector<320x64xf32>
    %c0_78 = arith.constant 0 : index
    %c0_79 = arith.constant 0 : index
    %204 = vector.load %arg6[%c0_78, %c0_79] : memref<8x320xf32, #tpu.memory_space<vmem>>, vector<8x320xf32>
    %cst_80 = arith.constant dense<0.000000e+00> : vector<8x64xf32>
    %205 = tpu.matmul %204, %203, %cst_80 {dimension_numbers = #tpu.dot_dimension_numbers<[1], [0], [0], [1], [0, 0, 1, 1], [], []>} : vector<8x320xf32>, vector<320x64xf32>, vector<8x64xf32> -> vector<8x64xf32>
    %206 = vector.broadcast %6 : vector<8x1xf32> to vector<8x64xf32>
    %207 = arith.addf %205, %206 : vector<8x64xf32>
    %208 = vector.extract_strided_slice %207 {offsets = [0, 0], sizes = [1, 64], strides = [1, 1]} : vector<8x64xf32> to vector<1x64xf32>
    %209 = vector.extract_strided_slice %207 {offsets = [1, 0], sizes = [1, 64], strides = [1, 1]} : vector<8x64xf32> to vector<1x64xf32>
    %210 = vector.extract_strided_slice %207 {offsets = [2, 0], sizes = [1, 64], strides = [1, 1]} : vector<8x64xf32> to vector<1x64xf32>
    %211 = vector.extract_strided_slice %207 {offsets = [3, 0], sizes = [1, 64], strides = [1, 1]} : vector<8x64xf32> to vector<1x64xf32>
    %212 = vector.extract_strided_slice %207 {offsets = [4, 0], sizes = [1, 64], strides = [1, 1]} : vector<8x64xf32> to vector<1x64xf32>
    %213 = vector.extract_strided_slice %207 {offsets = [5, 0], sizes = [1, 64], strides = [1, 1]} : vector<8x64xf32> to vector<1x64xf32>
    %214 = vector.extract_strided_slice %207 {offsets = [6, 0], sizes = [1, 64], strides = [1, 1]} : vector<8x64xf32> to vector<1x64xf32>
    %215 = vector.extract_strided_slice %207 {offsets = [7, 0], sizes = [1, 64], strides = [1, 1]} : vector<8x64xf32> to vector<1x64xf32>
    %216 = tpu.concatenate %208, %209, %210, %211, %212, %213, %214, %215 in 1 : vector<1x64xf32>, vector<1x64xf32>, vector<1x64xf32>, vector<1x64xf32>, vector<1x64xf32>, vector<1x64xf32>, vector<1x64xf32>, vector<1x64xf32> -> vector<1x512xf32>
    %c0_81 = arith.constant 0 : index
    %c0_82 = arith.constant 0 : index
    %c0_83 = arith.constant 0 : index
    %217 = vector.load %arg7[%c0_81, %c0_82, %c0_83] : memref<1x1x512xf32, #tpu.memory_space<vmem>>, vector<1x1x512xf32>
    %218 = vector.shape_cast %217 : vector<1x1x512xf32> to vector<1x512xf32>
    %219 = vector.shape_cast %216 : vector<1x512xf32> to vector<1x1x512xf32>
    tpu.vector_store %arg7[%c0_81, %c0_82, %c0_83], %219 {strides = array<i32>} : memref<1x1x512xf32, #tpu.memory_space<vmem>>, vector<1x1x512xf32>,
    return
  }
  func.func @transform_0(%arg0: i32) -> (i32, i32, i32) {
    %c0_i32 = arith.constant 0 : i32
    %c0_i32_0 = arith.constant 0 : i32
    %c0_i32_1 = arith.constant 0 : i32
    return %arg0, %c0_i32, %c0_i32_0 : i32, i32, i32
  }
  func.func @transform_1(%arg0: i32) -> (i32, i32) {
    %c0_i32 = arith.constant 0 : i32
    %c0_i32_0 = arith.constant 0 : i32
    %c0_i32_1 = arith.constant 0 : i32
    return %c0_i32, %c0_i32_0 : i32, i32
  }
  func.func @transform_2(%arg0: i32) -> (i32, i32, i32) {
    %c0_i32 = arith.constant 0 : i32
    %c0_i32_0 = arith.constant 0 : i32
    %c0_i32_1 = arith.constant 0 : i32
    %c0_i32_2 = arith.constant 0 : i32
    return %c0_i32, %c0_i32_0, %c0_i32_1 : i32, i32, i32
  }
  func.func @transform_3(%arg0: i32) -> (i32, i32) {
    %c0_i32 = arith.constant 0 : i32
    %c0_i32_0 = arith.constant 0 : i32
    %c0_i32_1 = arith.constant 0 : i32
    return %c0_i32, %c0_i32_0 : i32, i32
  }
  func.func @transform_4(%arg0: i32) -> (i32, i32) {
    %c0_i32 = arith.constant 0 : i32
    %c0_i32_0 = arith.constant 0 : i32
    %c0_i32_1 = arith.constant 0 : i32
    return %c0_i32, %c0_i32_0 : i32, i32
  }
  func.func @transform_5(%arg0: i32) -> (i32, i32) {
    %c0_i32 = arith.constant 0 : i32
    %c0_i32_0 = arith.constant 0 : i32
    %c0_i32_1 = arith.constant 0 : i32
    return %c0_i32, %c0_i32_0 : i32, i32
  }
  func.func @transform_6(%arg0: i32) -> (i32, i32, i32) {
    %c0_i32 = arith.constant 0 : i32
    %c0_i32_0 = arith.constant 0 : i32
    %c0_i32_1 = arith.constant 0 : i32
    return %arg0, %c0_i32, %c0_i32_0 : i32, i32, i32
  }
}

</mosaic_0001>

<llo_original>
// kernel: downsample_block_forward.1
$region0: #{downsample_block_forward.1}
  #allocation0 [shape = 'u32[]', space=smem, size = 0x4, offset = 0x4, fixed_abs, tag = 'smem constant byte address 0x4 - core index']
  #allocation1 [shape = 'u32[72,128]{1,0:T(1,128)}', space=vmem, size = 0x9000, scoped, tag = 'internal scratch']
  %s0 = inlined_call_operand.vmem [shape: f32[2,4,256], index: 0, kind: input, shape index: {}]
  %s1 = inlined_call_operand.hbm [shape: f32[256,256], index: 1, kind: input, shape index: {}]
  %s2 = inlined_call_operand.vmem [shape: f32[18,4,256], index: 2, kind: input, shape index: {}]
  %s3 = inlined_call_operand.hbm [shape: f32[9,64], index: 3, kind: input, shape index: {}]
  %s4 = inlined_call_operand.hbm [shape: f32[8,16], index: 4, kind: input, shape index: {}]
  %s5 = inlined_call_operand.hbm [shape: f32[8,320], index: 5, kind: input, shape index: {}]
  %s6 = inlined_call_operand.vmem [shape: f32[2,1,512], index: 6, kind: output, shape index: {}]
  %s7 = sld [smem:[#allocation0]]
  $region73: #{downsample_block_forward.1} parent=0
    _
  %s9 = ssub.s32 1, %s7
  %s10 = scalar_select 0, %s9, %s7
  $region1: #{downsample_block_forward.1} parent=0
    #allocation2 [shape = 'u8[262144]{0}', space=vmem, size = 0x40000, scoped, tag = 'input window, operand 1, single buffered']
    #allocation3 [shape = 's32[2]{0}', space=sflag, size = 0x8, scoped, tag = 'scoped memory for downsample_block_forward.1']
    #allocation4 [shape = 'u8[8192]{0}', space=vmem, size = 0x2000, scoped, tag = 'input window, operand 3, single buffered']
    #allocation5 [shape = 's32[1]{0}', space=sflag, size = 0x4, scoped, tag = 'scoped memory for downsample_block_forward.1']
    #allocation6 [shape = 'u8[4096]{0}', space=vmem, size = 0x1000, scoped, tag = 'input window, operand 4, single buffered']
    #allocation7 [shape = 'u8[12288]{0}', space=vmem, size = 0x3000, scoped, tag = 'input window, operand 5, single buffered']
    #allocation8 [shape = 's32[1]{0}', space=sflag, size = 0x4, scoped, tag = 'scoped memory for downsample_block_forward.1']
    %11 = vsyncpa [#allocation3], 0
    %12 = vsyncpa [#allocation5], 0
    %13 = vsyncpa [#allocation8], 0
    loop: start=0, step=1, limit=4
    $region2: #{downsample_block_forward.1} parent=1 // loop_pre_header
      _
    $region3: #{downsample_block_forward.1} parent=1 // loop_header
      %s15 = sphi 0, %s19
      %p16 = scmp.ge.s32.totalorder %s15, 4
      %s25 = sphi 0, %s27
      %s28 = sphi 0, %s25
      %s29 = sphi 0, %s28
      %s45 = sphi 0, %s29
      %s49 = sphi 0, %s49
      %s51 = sphi 0, %s49
      %s52 = sphi 0, %s51
      %s66 = sphi 0, %s52
      %s70 = sphi 0, %s70
      %s72 = sphi 0, %s70
      %s73 = sphi 0, %s72
      %s87 = sphi 0, %s73
      %s91 = sphi 0, %s91
      %s93 = sphi 0, %s91
      %s94 = sphi 0, %s93
      %s108 = sphi 0, %s94
      %s112 = sphi 0, %s112
      %s114 = sphi 0, %s112
      %s115 = sphi 0, %s114
      %s129 = sphi 0, %s115
      %s133 = sphi 0, %s133
      %s135 = sphi 0, %s133
      %s136 = sphi 0, %s135
      %s150 = sphi 0, %s136
      %s156 = sphi 0, %s158
      %s159 = sphi 0, %s156
      %s160 = sphi 0, %s159
      %s176 = sphi 0, %s160
    $region4: #{downsample_block_forward.1} parent=1 // loop_header_branch
      %18 = sbr.rel (%p16) target = $region8
    $region5: #{downsample_block_forward.1} parent=1 // loop_body
      %s20 = ssub.s32 %s15, 1
      %s21 = ssub.s32 %s15, 2
      %s22 = sadd.s32 %s15, 1
      %s23 = ssub.s32 %s15, %s22
      %p24 = scmp.eq.s32.totalorder %s23, 0
      %s26 = sadd.s32 %s25, 1
      %s27 = scalar_select %p24, %s25, %s26
      %p30 = pneg %p24
      %p31 = scmp.eq.s32.totalorder %s15, 1
      %p32 = por %p30, %p31
      %p33 = scmp.ne.s32.totalorder %s25, %s28
      %p34 = scmp.eq.s32.totalorder %s15, 0
      %p35 = por %p33, %p34
      %p36 = scmp.ne.s32.totalorder %s25, %s28
      %p37 = scmp.eq.s32.totalorder %s20, 1
      %p38 = por %p36, %p37
      %p39 = scmp.ne.s32.totalorder %s28, %s29
      %p40 = scmp.eq.s32.totalorder %s20, 0
      %p41 = por %p39, %p40
      %p42 = scmp.ne.s32.totalorder %s28, %s29
      %p43 = scmp.eq.s32.totalorder %s21, 1
      %p44 = por %p42, %p43
      %p46 = scmp.ne.s32.totalorder %s29, %s45
      %p47 = scmp.eq.s32.totalorder %s21, 0
      %p48 = por %p46, %p47
      %s50 = sadd.s32 %s49, 1
      %p53 = scmp.eq.s32.totalorder %s15, 1
      %p54 = scmp.ne.s32.totalorder %s49, %s51
      %p55 = scmp.eq.s32.totalorder %s15, 0
      %p56 = por %p54, %p55
      %p57 = scmp.ne.s32.totalorder %s49, %s51
      %p58 = scmp.eq.s32.totalorder %s20, 1
      %p59 = por %p57, %p58
      %p60 = scmp.ne.s32.totalorder %s51, %s52
      %p61 = scmp.eq.s32.totalorder %s20, 0
      %p62 = por %p60, %p61
      %p63 = scmp.ne.s32.totalorder %s51, %s52
      %p64 = scmp.eq.s32.totalorder %s21, 1
      %p65 = por %p63, %p64
      %p67 = scmp.ne.s32.totalorder %s52, %s66
      %p68 = scmp.eq.s32.totalorder %s21, 0
      %p69 = por %p67, %p68
      %s71 = sadd.s32 %s70, 1
      %p74 = scmp.eq.s32.totalorder %s15, 1
      %p75 = scmp.ne.s32.totalorder %s70, %s72
      %p76 = scmp.eq.s32.totalorder %s15, 0
      %p77 = por %p75, %p76
      %p78 = scmp.ne.s32.totalorder %s70, %s72
      %p79 = scmp.eq.s32.totalorder %s20, 1
      %p80 = por %p78, %p79
      %p81 = scmp.ne.s32.totalorder %s72, %s73
      %p82 = scmp.eq.s32.totalorder %s20, 0
      %p83 = por %p81, %p82
      %p84 = scmp.ne.s32.totalorder %s72, %s73
      %p85 = scmp.eq.s32.totalorder %s21, 1
      %p86 = por %p84, %p85
      %p88 = scmp.ne.s32.totalorder %s73, %s87
      %p89 = scmp.eq.s32.totalorder %s21, 0
      %p90 = por %p88, %p89
      %s92 = sadd.s32 %s91, 1
      %p95 = scmp.eq.s32.totalorder %s15, 1
      %p96 = scmp.ne.s32.totalorder %s91, %s93
      %p97 = scmp.eq.s32.totalorder %s15, 0
      %p98 = por %p96, %p97
      %p99 = scmp.ne.s32.totalorder %s91, %s93
      %p100 = scmp.eq.s32.totalorder %s20, 1
      %p101 = por %p99, %p100
      %p102 = scmp.ne.s32.totalorder %s93, %s94
      %p103 = scmp.eq.s32.totalorder %s20, 0
      %p104 = por %p102, %p103
      %p105 = scmp.ne.s32.totalorder %s93, %s94
      %p106 = scmp.eq.s32.totalorder %s21, 1
      %p107 = por %p105, %p106
      %p109 = scmp.ne.s32.totalorder %s94, %s108
      %p110 = scmp.eq.s32.totalorder %s21, 0
      %p111 = por %p109, %p110
      %s113 = sadd.s32 %s112, 1
      %p116 = scmp.eq.s32.totalorder %s15, 1
      %p117 = scmp.ne.s32.totalorder %s112, %s114
      %p118 = scmp.eq.s32.totalorder %s15, 0
      %p119 = por %p117, %p118
      %p120 = scmp.ne.s32.totalorder %s112, %s114
      %p121 = scmp.eq.s32.totalorder %s20, 1
      %p122 = por %p120, %p121
      %p123 = scmp.ne.s32.totalorder %s114, %s115
      %p124 = scmp.eq.s32.totalorder %s20, 0
      %p125 = por %p123, %p124
      %p126 = scmp.ne.s32.totalorder %s114, %s115
      %p127 = scmp.eq.s32.totalorder %s21, 1
      %p128 = por %p126, %p127
      %p130 = scmp.ne.s32.totalorder %s115, %s129
      %p131 = scmp.eq.s32.totalorder %s21, 0
      %p132 = por %p130, %p131
      %s134 = sadd.s32 %s133, 1
      %p137 = scmp.eq.s32.totalorder %s15, 1
      %p138 = scmp.ne.s32.totalorder %s133, %s135
      %p139 = scmp.eq.s32.totalorder %s15, 0
      %p140 = por %p138, %p139
      %p141 = scmp.ne.s32.totalorder %s133, %s135
      %p142 = scmp.eq.s32.totalorder %s20, 1
      %p143 = por %p141, %p142
      %p144 = scmp.ne.s32.totalorder %s135, %s136
      %p145 = scmp.eq.s32.totalorder %s20, 0
      %p146 = por %p144, %p145
      %p147 = scmp.ne.s32.totalorder %s135, %s136
      %p148 = scmp.eq.s32.totalorder %s21, 1
      %p149 = por %p147, %p148
      %p151 = scmp.ne.s32.totalorder %s136, %s150
      %p152 = scmp.eq.s32.totalorder %s21, 0
      %p153 = por %p151, %p152
      %s154 = ssub.s32 %s15, %s22
      %p155 = scmp.eq.s32.totalorder %s154, 0
      %s157 = sadd.s32 %s156, 1
      %s158 = scalar_select %p155, %s156, %s157
      %p161 = pneg %p155
      %p162 = scmp.eq.s32.totalorder %s15, 1
      %p163 = por %p161, %p162
      %p164 = scmp.ne.s32.totalorder %s156, %s159
      %p165 = scmp.eq.s32.totalorder %s15, 0
      %p166 = por %p164, %p165
      %p167 = scmp.ne.s32.totalorder %s156, %s159
      %p168 = scmp.eq.s32.totalorder %s20, 1
      %p169 = por %p167, %p168
      %p170 = scmp.ne.s32.totalorder %s159, %s160
      %p171 = scmp.eq.s32.totalorder %s20, 0
      %p172 = por %p170, %p171
      %p173 = scmp.ne.s32.totalorder %s159, %s160
      %p174 = scmp.eq.s32.totalorder %s21, 1
      %p175 = por %p173, %p174
      %p177 = scmp.ne.s32.totalorder %s160, %s176
      %p178 = scmp.eq.s32.totalorder %s21, 0
      %p179 = por %p177, %p178
      %p180 = scmp.le.s32.totalorder 1, %s15
      %p181 = scmp.lt.s32.totalorder %s15, 3
      %p182 = pnand %p180, %p181
      %p183 = pneg %p182
      // Predicated region
      $region9: #{downsample_block_forward.1} parent=5 // pred_check
        _
      $region10: #{downsample_block_forward.1} parent=5 // pred_check_branch
        %185 = sbr.rel (%p182) target = $region12
      $region11: #{downsample_block_forward.1} parent=5 // pred_region
        %s186 = ssub.s32 %s15, 1
        // Predicated region
        $region13: #{downsample_block_forward.1} parent=11 // pred_check
          %p187 = pneg %p62
        $region14: #{downsample_block_forward.1} parent=11 // pred_check_branch
          %189 = sbr.rel (%p187) target = $region16
        $region15: #{downsample_block_forward.1} parent=11 // pred_region
          %191 = vsyncadd [#allocation3], 0
          %s192 = sshll.u32 %s1, 4
          %s193 = int_to_ptr.hbm [resolvable:$true] %s192
          %s194 = sshll.u32 [#allocation2], 4
          %s195 = int_to_ptr.vmem [resolvable:$true] %s194
          %200 = dma.hbm_to_vmem [thread:$0]  %s193, 8192, %s195, [#allocation3], 256, 256, 16
        $region16: #{downsample_block_forward.1} parent=11 // pred_fallthru
          _
        // Predicated region
        $region17: #{downsample_block_forward.1} parent=11 // pred_check
          %p201 = pneg %p83
        $region18: #{downsample_block_forward.1} parent=11 // pred_check_branch
          %203 = sbr.rel (%p201) target = $region20
        $region19: #{downsample_block_forward.1} parent=11 // pred_region
          _
        $region20: #{downsample_block_forward.1} parent=11 // pred_fallthru
          _
        // Predicated region
        $region21: #{downsample_block_forward.1} parent=11 // pred_check
          %p204 = pneg %p104
        $region22: #{downsample_block_forward.1} parent=11 // pred_check_branch
          %206 = sbr.rel (%p204) target = $region24
        $region23: #{downsample_block_forward.1} parent=11 // pred_region
          %208 = vsyncadd [#allocation5], 0
          %s209 = sshll.u32 %s3, 4
          %s210 = int_to_ptr.hbm [resolvable:$true] %s209
          %s211 = sshll.u32 [#allocation4], 4
          %s212 = int_to_ptr.vmem [resolvable:$true] %s211
          %217 = dma.hbm_to_vmem [thread:$0]  %s210, 256, %s212, [#allocation5], 128, 128, 8
        $region24: #{downsample_block_forward.1} parent=11 // pred_fallthru
          _
        // Predicated region
        $region25: #{downsample_block_forward.1} parent=11 // pred_check
          %p218 = pneg %p125
        $region26: #{downsample_block_forward.1} parent=11 // pred_check_branch
          %220 = sbr.rel (%p218) target = $region28
        $region27: #{downsample_block_forward.1} parent=11 // pred_region
          %222 = vsyncadd [#allocation5], 0
          %s224 = sshll.u32 %s4, 4
          %s225 = int_to_ptr.hbm [resolvable:$true] %s224
          %s226 = sshll.u32 [#allocation6], 4
          %s227 = int_to_ptr.vmem [resolvable:$true] %s226
          %229 = dma.hbm_to_vmem [thread:$0]  %s225, 128, %s227, [#allocation5]
        $region28: #{downsample_block_forward.1} parent=11 // pred_fallthru
          _
        // Predicated region
        $region29: #{downsample_block_forward.1} parent=11 // pred_check
          %p230 = pneg %p146
        $region30: #{downsample_block_forward.1} parent=11 // pred_check_branch
          %232 = sbr.rel (%p230) target = $region32
        $region31: #{downsample_block_forward.1} parent=11 // pred_region
          %234 = vsyncadd [#allocation8], 0
          %s236 = sshll.u32 %s5, 4
          %s237 = int_to_ptr.hbm [resolvable:$true] %s236
          %s238 = sshll.u32 [#allocation7], 4
          %s239 = int_to_ptr.vmem [resolvable:$true] %s238
          %241 = dma.hbm_to_vmem [thread:$0]  %s237, 384, %s239, [#allocation8]
        $region32: #{downsample_block_forward.1} parent=11 // pred_fallthru
          _
      $region12: #{downsample_block_forward.1} parent=5 // pred_fallthru
        _
      %p242 = scmp.lt.s32.totalorder %s15, 2
      // Predicated region
      $region33: #{downsample_block_forward.1} parent=5 // pred_check
        %p243 = pneg %p242
      $region34: #{downsample_block_forward.1} parent=5 // pred_check_branch
        %245 = sbr.rel (%p243) target = $region36
      $region35: #{downsample_block_forward.1} parent=5 // pred_region
        // Predicated region
        $region37: #{downsample_block_forward.1} parent=35 // pred_check
          %p246 = pneg %p35
        $region38: #{downsample_block_forward.1} parent=35 // pred_check_branch
          %248 = sbr.rel (%p246) target = $region40
        $region39: #{downsample_block_forward.1} parent=35 // pred_region
          %p249 = scmp.lt.s32.totalorder %s15, 1
          %s250 = scalar_select %p249, %s15, 1
          %s251 = smul.addr %s250, 2
          %s252 = smul.addr %s251, 4
          %s253 = scalar_lea.vmem %s0, %s252
        $region40: #{downsample_block_forward.1} parent=35 // pred_fallthru
          _
      $region36: #{downsample_block_forward.1} parent=5 // pred_fallthru
        _
      %p254 = scmp.le.s32.totalorder 1, %s15
      %p255 = scmp.lt.s32.totalorder %s15, 3
      %p256 = pnand %p254, %p255
      %p257 = pneg %p256
      // Predicated region
      $region41: #{downsample_block_forward.1} parent=5 // pred_check
        _
      $region42: #{downsample_block_forward.1} parent=5 // pred_check_branch
        %259 = sbr.rel (%p256) target = $region44
      $region43: #{downsample_block_forward.1} parent=5 // pred_region
        %s260 = ssub.s32 %s15, 1
        // Predicated region
        $region45: #{downsample_block_forward.1} parent=43 // pred_check
          %p261 = pneg %p62
        $region46: #{downsample_block_forward.1} parent=43 // pred_check_branch
          %263 = sbr.rel (%p261) target = $region48
        $region47: #{downsample_block_forward.1} parent=43 // pred_region
          %265 = dma.done [#allocation3], 8192
        $region48: #{downsample_block_forward.1} parent=43 // pred_fallthru
          _
        // Predicated region
        $region49: #{downsample_block_forward.1} parent=43 // pred_check
          %p266 = pneg %p104
        $region50: #{downsample_block_forward.1} parent=43 // pred_check_branch
          %268 = sbr.rel (%p266) target = $region52
        $region51: #{downsample_block_forward.1} parent=43 // pred_region
          %270 = dma.done [#allocation5], 256
        $region52: #{downsample_block_forward.1} parent=43 // pred_fallthru
          _
        // Predicated region
        $region53: #{downsample_block_forward.1} parent=43 // pred_check
          %p271 = pneg %p125
        $region54: #{downsample_block_forward.1} parent=43 // pred_check_branch
          %273 = sbr.rel (%p271) target = $region56
        $region55: #{downsample_block_forward.1} parent=43 // pred_region
          %275 = dma.done [#allocation5], 128
        $region56: #{downsample_block_forward.1} parent=43 // pred_fallthru
          _
        // Predicated region
        $region57: #{downsample_block_forward.1} parent=43 // pred_check
          %p276 = pneg %p146
        $region58: #{downsample_block_forward.1} parent=43 // pred_check_branch
          %278 = sbr.rel (%p276) target = $region60
        $region59: #{downsample_block_forward.1} parent=43 // pred_region
          %280 = dma.done [#allocation8], 384
        $region60: #{downsample_block_forward.1} parent=43 // pred_fallthru
          _
        %p281 = scmp.lt.s32.totalorder %s20, 1
        %s282 = scalar_select %p281, %s20, 1
        %s283 = smul.addr %s282, 2
        %s284 = smul.addr %s283, 4
        %s285 = scalar_lea.vmem %s0, %s284
        %p286 = pneg %p41
        %p287 = pneg %p38
        %p288 = pneg %p62
        %p289 = pneg %p59
        %p290 = pneg %p83
        %p291 = pneg %p80
        %p292 = pneg %p104
        %p293 = pneg %p101
        %p294 = pneg %p125
        %p295 = pneg %p122
        %p296 = pneg %p146
        %p297 = pneg %p143
        %p298 = pneg %p172
        %p299 = pneg %p169
        %p300 = scmp.lt.s32.totalorder %s20, 1
        %s301 = scalar_select %p300, %s20, 1
        %s302 = smul.addr %s301, 4
        %s303 = scalar_lea.vmem %s6, %s302
        %p304 = scmp.lt.s32.totalorder %s20, 1
        %s305 = scalar_select %p304, %s20, 1
        %s306 = smul.addr %s305, 2
        %s307 = smul.addr %s306, 4
        %s308 = scalar_lea.vmem %s0, %s307
        %p309 = scmp.lt.s32.totalorder %s20, 1
        %s310 = scalar_select %p309, %s20, 1
        %s311 = smul.addr %s310, 4
        %s312 = scalar_lea.vmem %s6, %s311
        %v313 = vld [vmem:[#allocation6] sm:$0xf]
        %v314 = vld [vmem:[#allocation6] sm:$0xff]
        %v315 = vld [vmem:[%s308] sm:$0xff]
        %v316 = vmax.f32 %v315, 0.0
        %s317 = scalar_lea.vmem %s2, 32
        %v318 = vld [vmem:[%s317] sm:$0xff]
        %v319 = vmul.f32 %v316, %v318
        %321 = vst [vmem:[#allocation1] ss:$2 sm:$0xff] %v316
        %v322 = vld.sshfl [vmem:[#allocation1 + $0x8] sm:$0xff pattern:$0x75316420]
        %323 = vrot.lane.b32.xlu0 %v322, 17
        %v324 = vpop.permute.xlu0 %323
        %326 = vst [vmem:[#allocation1] ss:$2 sm:$0xff] %v316
        %v327 = vld.sshfl [vmem:[#allocation1] sm:$0xff pattern:$0x75316420]
        %v328 = vld.sshfl [vmem:[#allocation1 + $0x8] sm:$0xff pattern:$0x75316420]
        %329 = vrot.lane.b32.xlu0 %v327, 17
        %v330 = vpop.permute.xlu0 %329
        %331 = vrot.lane.b32.xlu0 %v328, 17
        %v332 = vpop.permute.xlu0 %331
        %vm333 = vcmask 138240
        %v334 = vsel %vm333, %v330, %v332
        %v337 = vsel %vm333, %v324, %v330
        %v338 = vld [vmem:[%s2] sm:$0xff]
        %340 = vst [vmem:[#allocation1] ss:$2 sm:$0xff] %v338
        %v341 = vld.sshfl [vmem:[#allocation1] sm:$0xff pattern:$0x75316420]
        %v342 = vld.sshfl [vmem:[#allocation1 + $0x8] sm:$0xff pattern:$0x75316420]
        %v345 = vmul.f32 %v337, %v341
        %v346 = vmul.f32 %v334, %v342
        %v349 = vrot.slane %v346, 4
        %vm350 = vcmask 1043456
        %v351 = vsel %vm350, %v345, %v349
        %v353 = vadd.f32 %v319, %v351
        %354 = vst [vmem:[#allocation1] ss:$2 sm:$0xff] %v316
        %v355 = vld.sshfl [vmem:[#allocation1 + $0x8] sm:$0xff pattern:$0x75316420]
        %356 = vrot.lane.b32.xlu0 %v355, 16
        %v357 = vpop.permute.xlu0 %356
        %359 = vst [vmem:[#allocation1] ss:$2 sm:$0xff] %v316
        %v360 = vld.sshfl [vmem:[#allocation1] sm:$0xff pattern:$0x75316420]
        %v361 = vld.sshfl [vmem:[#allocation1 + $0x8] sm:$0xff pattern:$0x75316420]
        %362 = vrot.lane.b32.xlu0 %v360, 16
        %v363 = vpop.permute.xlu0 %362
        %364 = vrot.lane.b32.xlu0 %v361, 16
        %v365 = vpop.permute.xlu0 %364
        %vm366 = vcmask 130048
        %v367 = vsel %vm366, %v363, %v365
        %v370 = vsel %vm366, %v357, %v363
        %s371 = scalar_lea.vmem %s2, 8
        %v372 = vld [vmem:[%s371] sm:$0xff]
        %374 = vst [vmem:[#allocation1] ss:$2 sm:$0xff] %v372
        %v375 = vld.sshfl [vmem:[#allocation1] sm:$0xff pattern:$0x75316420]
        %v376 = vld.sshfl [vmem:[#allocation1 + $0x8] sm:$0xff pattern:$0x75316420]
        %v379 = vmul.f32 %v370, %v375
        %v380 = vmul.f32 %v367, %v376
        %v383 = vrot.slane %v380, 4
        %v384 = vsel %vm350, %v379, %v383
        %v386 = vadd.f32 %v353, %v384
        %387 = vst [vmem:[#allocation1] ss:$2 sm:$0xff] %v316
        %v388 = vld.sshfl [vmem:[#allocation1 + $0x8] sm:$0xff pattern:$0x75316420]
        %389 = vrot.lane.b32.xlu0 %v388, 15
        %v390 = vpop.permute.xlu0 %389
        %392 = vst [vmem:[#allocation1] ss:$2 sm:$0xff] %v316
        %v393 = vld.sshfl [vmem:[#allocation1] sm:$0xff pattern:$0x75316420]
        %v394 = vld.sshfl [vmem:[#allocation1 + $0x8] sm:$0xff pattern:$0x75316420]
        %395 = vrot.lane.b32.xlu0 %v393, 15
        %v396 = vpop.permute.xlu0 %395
        %397 = vrot.lane.b32.xlu0 %v394, 15
        %v398 = vpop.permute.xlu0 %397
        %vm399 = vcmask 121856
        %v400 = vsel %vm399, %v396, %v398
        %v403 = vsel %vm399, %v390, %v396
        %s404 = scalar_lea.vmem %s2, 16
        %v405 = vld [vmem:[%s404] sm:$0xff]
        %407 = vst [vmem:[#allocation1] ss:$2 sm:$0xff] %v405
        %v408 = vld.sshfl [vmem:[#allocation1] sm:$0xff pattern:$0x75316420]
        %v409 = vld.sshfl [vmem:[#allocation1 + $0x8] sm:$0xff pattern:$0x75316420]
        %v412 = vmul.f32 %v403, %v408
        %v413 = vmul.f32 %v400, %v409
        %v416 = vrot.slane %v413, 4
        %v417 = vsel %vm350, %v412, %v416
        %v419 = vadd.f32 %v386, %v417
        %420 = vst [vmem:[#allocation1] ss:$2 sm:$0xff] %v316
        %v421 = vld.sshfl [vmem:[#allocation1 + $0x8] sm:$0xff pattern:$0x75316420]
        %422 = vrot.lane.b32.xlu0 %v421, 1
        %v423 = vpop.permute.xlu0 %422
        %425 = vst [vmem:[#allocation1] ss:$2 sm:$0xff] %v316
        %v426 = vld.sshfl [vmem:[#allocation1] sm:$0xff pattern:$0x75316420]
        %v427 = vld.sshfl [vmem:[#allocation1 + $0x8] sm:$0xff pattern:$0x75316420]
        %428 = vrot.lane.b32.xlu0 %v426, 1
        %v429 = vpop.permute.xlu0 %428
        %430 = vrot.lane.b32.xlu0 %v427, 1
        %v431 = vpop.permute.xlu0 %430
        %vm432 = vcmask 7168
        %v433 = vsel %vm432, %v429, %v431
        %v436 = vsel %vm432, %v423, %v429
        %s437 = scalar_lea.vmem %s2, 24
        %v438 = vld [vmem:[%s437] sm:$0xff]
        %440 = vst [vmem:[#allocation1] ss:$2 sm:$0xff] %v438
        %v441 = vld.sshfl [vmem:[#allocation1] sm:$0xff pattern:$0x75316420]
        %v442 = vld.sshfl [vmem:[#allocation1 + $0x8] sm:$0xff pattern:$0x75316420]
        %v445 = vmul.f32 %v436, %v441
        %v446 = vmul.f32 %v433, %v442
        %v449 = vrot.slane %v446, 4
        %v450 = vsel %vm350, %v445, %v449
        %v452 = vadd.f32 %v419, %v450
        %453 = vst [vmem:[#allocation1] ss:$2 sm:$0xff] %v316
        %v454 = vld.sshfl [vmem:[#allocation1] sm:$0xff pattern:$0x75316420]
        %v455 = vld.sshfl [vmem:[#allocation1 + $0x8] sm:$0xff pattern:$0x75316420]
        %456 = vrot.lane.b32.xlu0 %v454, 127
        %v457 = vpop.permute.xlu0 %456
        %458 = vrot.lane.b32.xlu0 %v455, 127
        %v459 = vpop.permute.xlu0 %458
        %vm460 = vcmask 1039360
        %v461 = vsel %vm460, %v457, %v459
        %464 = vst [vmem:[#allocation1] ss:$2 sm:$0xff] %v316
        %v465 = vld.sshfl [vmem:[#allocation1] sm:$0xff pattern:$0x75316420]
        %466 = vrot.lane.b32.xlu0 %v465, 127
        %v467 = vpop.permute.xlu0 %466
        %v469 = vsel %vm460, %v459, %v467
        %s470 = scalar_lea.vmem %s2, 40
        %v471 = vld [vmem:[%s470] sm:$0xff]
        %473 = vst [vmem:[#allocation1] ss:$2 sm:$0xff] %v471
        %v474 = vld.sshfl [vmem:[#allocation1] sm:$0xff pattern:$0x75316420]
        %v475 = vld.sshfl [vmem:[#allocation1 + $0x8] sm:$0xff pattern:$0x75316420]
        %v478 = vmul.f32 %v461, %v474
        %v479 = vmul.f32 %v469, %v475
        %v482 = vrot.slane %v479, 4
        %v483 = vsel %vm350, %v478, %v482
        %v485 = vadd.f32 %v452, %v483
        %486 = vst [vmem:[#allocation1] ss:$2 sm:$0xff] %v316
        %v487 = vld.sshfl [vmem:[#allocation1] sm:$0xff pattern:$0x75316420]
        %v488 = vld.sshfl [vmem:[#allocation1 + $0x8] sm:$0xff pattern:$0x75316420]
        %489 = vrot.lane.b32.xlu0 %v487, 113
        %v490 = vpop.permute.xlu0 %489
        %491 = vrot.lane.b32.xlu0 %v488, 113
        %v492 = vpop.permute.xlu0 %491
        %vm493 = vcmask 924672
        %v494 = vsel %vm493, %v490, %v492
        %497 = vst [vmem:[#allocation1] ss:$2 sm:$0xff] %v316
        %v498 = vld.sshfl [vmem:[#allocation1] sm:$0xff pattern:$0x75316420]
        %499 = vrot.lane.b32.xlu0 %v498, 113
        %v500 = vpop.permute.xlu0 %499
        %v502 = vsel %vm493, %v492, %v500
        %s503 = scalar_lea.vmem %s2, 48
        %v504 = vld [vmem:[%s503] sm:$0xff]
        %506 = vst [vmem:[#allocation1] ss:$2 sm:$0xff] %v504
        %v507 = vld.sshfl [vmem:[#allocation1] sm:$0xff pattern:$0x75316420]
        %v508 = vld.sshfl [vmem:[#allocation1 + $0x8] sm:$0xff pattern:$0x75316420]
        %v511 = vmul.f32 %v494, %v507
        %v512 = vmul.f32 %v502, %v508
        %v515 = vrot.slane %v512, 4
        %v516 = vsel %vm350, %v511, %v515
        %v518 = vadd.f32 %v485, %v516
        %519 = vst [vmem:[#allocation1] ss:$2 sm:$0xff] %v316
        %v520 = vld.sshfl [vmem:[#allocation1] sm:$0xff pattern:$0x75316420]
        %v521 = vld.sshfl [vmem:[#allocation1 + $0x8] sm:$0xff pattern:$0x75316420]
        %522 = vrot.lane.b32.xlu0 %v520, 112
        %v523 = vpop.permute.xlu0 %522
        %524 = vrot.lane.b32.xlu0 %v521, 112
        %v525 = vpop.permute.xlu0 %524
        %vm526 = vcmask 916480
        %v527 = vsel %vm526, %v523, %v525
        %530 = vst [vmem:[#allocation1] ss:$2 sm:$0xff] %v316
        %v531 = vld.sshfl [vmem:[#allocation1] sm:$0xff pattern:$0x75316420]
        %532 = vrot.lane.b32.xlu0 %v531, 112
        %v533 = vpop.permute.xlu0 %532
        %v535 = vsel %vm526, %v525, %v533
        %s536 = scalar_lea.vmem %s2, 56
        %v537 = vld [vmem:[%s536] sm:$0xff]
        %539 = vst [vmem:[#allocation1] ss:$2 sm:$0xff] %v537
        %v540 = vld.sshfl [vmem:[#allocation1] sm:$0xff pattern:$0x75316420]
        %v541 = vld.sshfl [vmem:[#allocation1 + $0x8] sm:$0xff pattern:$0x75316420]
        %v544 = vmul.f32 %v527, %v540
        %v545 = vmul.f32 %v535, %v541
        %v548 = vrot.slane %v545, 4
        %v549 = vsel %vm350, %v544, %v548
        %v551 = vadd.f32 %v518, %v549
        %552 = vst [vmem:[#allocation1] ss:$2 sm:$0xff] %v316
        %v553 = vld.sshfl [vmem:[#allocation1] sm:$0xff pattern:$0x75316420]
        %v554 = vld.sshfl [vmem:[#allocation1 + $0x8] sm:$0xff pattern:$0x75316420]
        %555 = vrot.lane.b32.xlu0 %v553, 111
        %v556 = vpop.permute.xlu0 %555
        %557 = vrot.lane.b32.xlu0 %v554, 111
        %v558 = vpop.permute.xlu0 %557
        %vm559 = vcmask 908288
        %v560 = vsel %vm559, %v556, %v558
        %563 = vst [vmem:[#allocation1] ss:$2 sm:$0xff] %v316
        %v564 = vld.sshfl [vmem:[#allocation1] sm:$0xff pattern:$0x75316420]
        %565 = vrot.lane.b32.xlu0 %v564, 111
        %v566 = vpop.permute.xlu0 %565
        %v568 = vsel %vm559, %v558, %v566
        %s569 = scalar_lea.vmem %s2, 64
        %v570 = vld [vmem:[%s569] sm:$0xff]
        %572 = vst [vmem:[#allocation1] ss:$2 sm:$0xff] %v570
        %v573 = vld.sshfl [vmem:[#allocation1] sm:$0xff pattern:$0x75316420]
        %v574 = vld.sshfl [vmem:[#allocation1 + $0x8] sm:$0xff pattern:$0x75316420]
        %v577 = vmul.f32 %v560, %v573
        %v578 = vmul.f32 %v568, %v574
        %v581 = vrot.slane %v578, 4
        %v582 = vsel %vm350, %v577, %v581
        %v584 = vadd.f32 %v551, %v582
        %586 = vset.pattern.permute.xlu0 12
        %587 = vperm.xlu0 %586, %v313
        %v588 = vpop.permute.xlu0 %587
        %591 = vst [vmem:[#allocation1] ss:$2 sm:$0xff] %v584
        %v592 = vld.sshfl [vmem:[#allocation1] sm:$0xff pattern:$0x75316420]
        %v593 = vld.sshfl [vmem:[#allocation1 + $0x8] sm:$0xff pattern:$0x75316420]
        %vm594 = vcmask 31744
        %v595 = vsel %vm594, %v313, 0
        %v597 = vsel %vm350, %v592, 0
        %v599 = vsel %vm350, %v593, 0
        %601 = vmatpush.msra.mxu0 0.0
        %602 = vmatpush.msra.mxu0 0.0
        %603 = vmatpush.msra.mxu0 0.0
        %604 = vmatpush.msra.mxu0 0.0
        %605 = vmatpush.msra.mxu0 0.0
        %606 = vmatpush.msra.mxu0 0.0
        %607 = vmatpush.msra.mxu0 0.0
        %608 = vmatpush.msra.mxu0 0.0
        %609 = vmatpush.msra.mxu0 0.0
        %610 = vmatpush.msra.mxu0 0.0
        %611 = vmatpush.msra.mxu0 0.0
        %612 = vmatpush.msra.mxu0 0.0
        %613 = vmatpush.msra.mxu0 0.0
        %614 = vmatpush.msra.mxu0 0.0
        %615 = vmatpush.msra.mxu0 0.0
        %616 = vmatpush.msra.mxu0 %v597
        %617 = vmatmul.f32.gmra.mxu0 %v595
        %v618 = vpop.f32.mrf.mxu0
        %v619 = vadd.f32 %v588, %v618
        %620 = vdwg.mxu0
        %621 = vmatpush.msra.mxu0 0.0
        %622 = vmatpush.msra.mxu0 0.0
        %623 = vmatpush.msra.mxu0 0.0
        %624 = vmatpush.msra.mxu0 0.0
        %625 = vmatpush.msra.mxu0 0.0
        %626 = vmatpush.msra.mxu0 0.0
        %627 = vmatpush.msra.mxu0 0.0
        %628 = vmatpush.msra.mxu0 0.0
        %629 = vmatpush.msra.mxu0 0.0
        %630 = vmatpush.msra.mxu0 0.0
        %631 = vmatpush.msra.mxu0 0.0
        %632 = vmatpush.msra.mxu0 0.0
        %633 = vmatpush.msra.mxu0 0.0
        %634 = vmatpush.msra.mxu0 0.0
        %635 = vmatpush.msra.mxu0 0.0
        %636 = vmatpush.msra.mxu0 %v599
        %637 = vmatmul.f32.gmra.mxu0 %v595
        %v638 = vpop.f32.mrf.mxu0
        %v639 = vadd.f32 %v588, %v638
        %640 = vdwg.mxu0
        %v641 = vmax.f32 %v619, 0.0
        %v642 = vmax.f32 %v639, 0.0
        %s643 = scalar_lea.vmem %s2, 104
        %v644 = vld [vmem:[%s643] sm:$0xff]
        %646 = vst [vmem:[#allocation1] ss:$2 sm:$0xff] %v644
        %v647 = vld.sshfl [vmem:[#allocation1] sm:$0xff pattern:$0x75316420]
        %v648 = vld.sshfl [vmem:[#allocation1 + $0x8] sm:$0xff pattern:$0x75316420]
        %v651 = vmul.f32 %v641, %v647
        %v652 = vmul.f32 %v642, %v648
        %654 = vrot.lane.b32.xlu0 %v642, 17
        %v655 = vpop.permute.xlu0 %654
        %658 = vrot.lane.b32.xlu0 %v641, 17
        %v659 = vpop.permute.xlu0 %658
        %v660 = vsel %vm333, %v659, %v655
        %v663 = vsel %vm333, %v655, %v659
        %s664 = scalar_lea.vmem %s2, 72
        %v665 = vld [vmem:[%s664] sm:$0xff]
        %667 = vst [vmem:[#allocation1] ss:$2 sm:$0xff] %v665
        %v668 = vld.sshfl [vmem:[#allocation1] sm:$0xff pattern:$0x75316420]
        %v669 = vld.sshfl [vmem:[#allocation1 + $0x8] sm:$0xff pattern:$0x75316420]
        %v672 = vmul.f32 %v663, %v668
        %v673 = vmul.f32 %v660, %v669
        %v674 = vadd.f32 %v651, %v672
        %v675 = vadd.f32 %v652, %v673
        %676 = vrot.lane.b32.xlu0 %v642, 16
        %v677 = vpop.permute.xlu0 %676
        %679 = vrot.lane.b32.xlu0 %v641, 16
        %v680 = vpop.permute.xlu0 %679
        %v681 = vsel %vm366, %v680, %v677
        %v684 = vsel %vm366, %v677, %v680
        %s685 = scalar_lea.vmem %s2, 80
        %v686 = vld [vmem:[%s685] sm:$0xff]
        %688 = vst [vmem:[#allocation1] ss:$2 sm:$0xff] %v686
        %v689 = vld.sshfl [vmem:[#allocation1] sm:$0xff pattern:$0x75316420]
        %v690 = vld.sshfl [vmem:[#allocation1 + $0x8] sm:$0xff pattern:$0x75316420]
        %v693 = vmul.f32 %v684, %v689
        %v694 = vmul.f32 %v681, %v690
        %v695 = vadd.f32 %v674, %v693
        %v696 = vadd.f32 %v675, %v694
        %697 = vrot.lane.b32.xlu0 %v642, 15
        %v698 = vpop.permute.xlu0 %697
        %700 = vrot.lane.b32.xlu0 %v641, 15
        %v701 = vpop.permute.xlu0 %700
        %v702 = vsel %vm399, %v701, %v698
        %v705 = vsel %vm399, %v698, %v701
        %s706 = scalar_lea.vmem %s2, 88
        %v707 = vld [vmem:[%s706] sm:$0xff]
        %709 = vst [vmem:[#allocation1] ss:$2 sm:$0xff] %v707
        %v710 = vld.sshfl [vmem:[#allocation1] sm:$0xff pattern:$0x75316420]
        %v711 = vld.sshfl [vmem:[#allocation1 + $0x8] sm:$0xff pattern:$0x75316420]
        %v714 = vmul.f32 %v705, %v710
        %v715 = vmul.f32 %v702, %v711
        %v716 = vadd.f32 %v695, %v714
        %v717 = vadd.f32 %v696, %v715
        %718 = vrot.lane.b32.xlu0 %v642, 1
        %v719 = vpop.permute.xlu0 %718
        %721 = vrot.lane.b32.xlu0 %v641, 1
        %v722 = vpop.permute.xlu0 %721
        %v723 = vsel %vm432, %v722, %v719
        %v726 = vsel %vm432, %v719, %v722
        %s727 = scalar_lea.vmem %s2, 96
        %v728 = vld [vmem:[%s727] sm:$0xff]
        %730 = vst [vmem:[#allocation1] ss:$2 sm:$0xff] %v728
        %v731 = vld.sshfl [vmem:[#allocation1] sm:$0xff pattern:$0x75316420]
        %v732 = vld.sshfl [vmem:[#allocation1 + $0x8] sm:$0xff pattern:$0x75316420]
        %v735 = vmul.f32 %v726, %v731
        %v736 = vmul.f32 %v723, %v732
        %v737 = vadd.f32 %v716, %v735
        %v738 = vadd.f32 %v717, %v736
        %739 = vrot.lane.b32.xlu0 %v641, 127
        %v740 = vpop.permute.xlu0 %739
        %741 = vrot.lane.b32.xlu0 %v642, 127
        %v742 = vpop.permute.xlu0 %741
        %v743 = vsel %vm460, %v740, %v742
        %v747 = vsel %vm460, %v742, %v740
        %s748 = scalar_lea.vmem %s2, 112
        %v749 = vld [vmem:[%s748] sm:$0xff]
        %751 = vst [vmem:[#allocation1] ss:$2 sm:$0xff] %v749
        %v752 = vld.sshfl [vmem:[#allocation1] sm:$0xff pattern:$0x75316420]
        %v753 = vld.sshfl [vmem:[#allocation1 + $0x8] sm:$0xff pattern:$0x75316420]
        %v756 = vmul.f32 %v743, %v752
        %v757 = vmul.f32 %v747, %v753
        %v758 = vadd.f32 %v737, %v756
        %v759 = vadd.f32 %v738, %v757
        %760 = vrot.lane.b32.xlu0 %v641, 113
        %v761 = vpop.permute.xlu0 %760
        %762 = vrot.lane.b32.xlu0 %v642, 113
        %v763 = vpop.permute.xlu0 %762
        %v764 = vsel %vm493, %v761, %v763
        %v768 = vsel %vm493, %v763, %v761
        %s769 = scalar_lea.vmem %s2, 120
        %v770 = vld [vmem:[%s769] sm:$0xff]
        %772 = vst [vmem:[#allocation1] ss:$2 sm:$0xff] %v770
        %v773 = vld.sshfl [vmem:[#allocation1] sm:$0xff pattern:$0x75316420]
        %v774 = vld.sshfl [vmem:[#allocation1 + $0x8] sm:$0xff pattern:$0x75316420]
        %v777 = vmul.f32 %v764, %v773
        %v778 = vmul.f32 %v768, %v774
        %v779 = vadd.f32 %v758, %v777
        %v780 = vadd.f32 %v759, %v778
        %781 = vrot.lane.b32.xlu0 %v641, 112
        %v782 = vpop.permute.xlu0 %781
        %783 = vrot.lane.b32.xlu0 %v642, 112
        %v784 = vpop.permute.xlu0 %783
        %v785 = vsel %vm526, %v782, %v784
        %v789 = vsel %vm526, %v784, %v782
        %s790 = scalar_lea.vmem %s2, 128
        %v791 = vld [vmem:[%s790] sm:$0xff]
        %793 = vst [vmem:[#allocation1] ss:$2 sm:$0xff] %v791
        %v794 = vld.sshfl [vmem:[#allocation1] sm:$0xff pattern:$0x75316420]
        %v795 = vld.sshfl [vmem:[#allocation1 + $0x8] sm:$0xff pattern:$0x75316420]
        %v798 = vmul.f32 %v785, %v794
        %v799 = vmul.f32 %v789, %v795
        %v800 = vadd.f32 %v779, %v798
        %v801 = vadd.f32 %v780, %v799
        %802 = vrot.lane.b32.xlu0 %v641, 111
        %v803 = vpop.permute.xlu0 %802
        %804 = vrot.lane.b32.xlu0 %v642, 111
        %v805 = vpop.permute.xlu0 %804
        %v806 = vsel %vm559, %v803, %v805
        %v810 = vsel %vm559, %v805, %v803
        %s811 = scalar_lea.vmem %s2, 136
        %v812 = vld [vmem:[%s811] sm:$0xff]
        %814 = vst [vmem:[#allocation1] ss:$2 sm:$0xff] %v812
        %v815 = vld.sshfl [vmem:[#allocation1] sm:$0xff pattern:$0x75316420]
        %v816 = vld.sshfl [vmem:[#allocation1 + $0x8] sm:$0xff pattern:$0x75316420]
        %v819 = vmul.f32 %v806, %v815
        %v820 = vmul.f32 %v810, %v816
        %v821 = vadd.f32 %v800, %v819
        %v822 = vadd.f32 %v801, %v820
        %824 = vset.pattern.permute.xlu0 13
        %825 = vperm.xlu0 %824, %v314
        %v826 = vpop.permute.xlu0 %825
        %828 = vrot.lane.b32.xlu0 %v314, 124
        %v829 = vpop.permute.xlu0 %828
        %v830 = vsel %vm594, %v829, 0
        %v833 = vsel %vm350, %v821, 0
        %v836 = vsel %vm350, %v822, 0
        %838 = vmatpush.msra.mxu0 0.0
        %839 = vmatpush.msra.mxu0 0.0
        %840 = vmatpush.msra.mxu0 0.0
        %841 = vmatpush.msra.mxu0 0.0
        %842 = vmatpush.msra.mxu0 0.0
        %843 = vmatpush.msra.mxu0 0.0
        %844 = vmatpush.msra.mxu0 0.0
        %845 = vmatpush.msra.mxu0 0.0
        %846 = vmatpush.msra.mxu0 0.0
        %847 = vmatpush.msra.mxu0 0.0
        %848 = vmatpush.msra.mxu0 0.0
        %849 = vmatpush.msra.mxu0 0.0
        %850 = vmatpush.msra.mxu0 0.0
        %851 = vmatpush.msra.mxu0 0.0
        %852 = vmatpush.msra.mxu0 0.0
        %853 = vmatpush.msra.mxu0 %v833
        %854 = vmatmul.f32.gmra.mxu0 %v830
        %v855 = vpop.f32.mrf.mxu0
        %v856 = vadd.f32 %v826, %v855
        %857 = vdwg.mxu0
        %858 = vmatpush.msra.mxu0 0.0
        %859 = vmatpush.msra.mxu0 0.0
        %860 = vmatpush.msra.mxu0 0.0
        %861 = vmatpush.msra.mxu0 0.0
        %862 = vmatpush.msra.mxu0 0.0
        %863 = vmatpush.msra.mxu0 0.0
        %864 = vmatpush.msra.mxu0 0.0
        %865 = vmatpush.msra.mxu0 0.0
        %866 = vmatpush.msra.mxu0 0.0
        %867 = vmatpush.msra.mxu0 0.0
        %868 = vmatpush.msra.mxu0 0.0
        %869 = vmatpush.msra.mxu0 0.0
        %870 = vmatpush.msra.mxu0 0.0
        %871 = vmatpush.msra.mxu0 0.0
        %872 = vmatpush.msra.mxu0 0.0
        %873 = vmatpush.msra.mxu0 %v836
        %874 = vmatmul.f32.gmra.mxu0 %v830
        %v875 = vpop.f32.mrf.mxu0
        %v876 = vadd.f32 %v826, %v875
        %877 = vdwg.mxu0
        %v878 = vmax.f32 %v856, 0.0
        %v879 = vmax.f32 %v876, 0.0
        %880 = vset.pattern.permute.xlu0 14
        %881 = vperm.xlu0 %880, %v314
        %v882 = vpop.permute.xlu0 %881
        %884 = vrot.lane.b32.xlu0 %v314, 120
        %v885 = vpop.permute.xlu0 %884
        %887 = vst [vmem:[#allocation1] ss:$2 sm:$0xff] %v315
        %v888 = vld.sshfl [vmem:[#allocation1] sm:$0xff pattern:$0x75316420]
        %v889 = vld.sshfl [vmem:[#allocation1 + $0x8] sm:$0xff pattern:$0x75316420]
        %v890 = vsel %vm594, %v885, 0
        %v892 = vsel %vm350, %v888, 0
        %v894 = vsel %vm350, %v889, 0
        %896 = vmatpush.msra.mxu0 0.0
        %897 = vmatpush.msra.mxu0 0.0
        %898 = vmatpush.msra.mxu0 0.0
        %899 = vmatpush.msra.mxu0 0.0
        %900 = vmatpush.msra.mxu0 0.0
        %901 = vmatpush.msra.mxu0 0.0
        %902 = vmatpush.msra.mxu0 0.0
        %903 = vmatpush.msra.mxu0 0.0
        %904 = vmatpush.msra.mxu0 0.0
        %905 = vmatpush.msra.mxu0 0.0
        %906 = vmatpush.msra.mxu0 0.0
        %907 = vmatpush.msra.mxu0 0.0
        %908 = vmatpush.msra.mxu0 0.0
        %909 = vmatpush.msra.mxu0 0.0
        %910 = vmatpush.msra.mxu0 0.0
        %911 = vmatpush.msra.mxu0 %v892
        %912 = vmatmul.f32.gmra.mxu0 %v890
        %v913 = vpop.f32.mrf.mxu0
        %v914 = vadd.f32 %v882, %v913
        %915 = vdwg.mxu0
        %916 = vmatpush.msra.mxu0 0.0
        %917 = vmatpush.msra.mxu0 0.0
        %918 = vmatpush.msra.mxu0 0.0
        %919 = vmatpush.msra.mxu0 0.0
        %920 = vmatpush.msra.mxu0 0.0
        %921 = vmatpush.msra.mxu0 0.0
        %922 = vmatpush.msra.mxu0 0.0
        %923 = vmatpush.msra.mxu0 0.0
        %924 = vmatpush.msra.mxu0 0.0
        %925 = vmatpush.msra.mxu0 0.0
        %926 = vmatpush.msra.mxu0 0.0
        %927 = vmatpush.msra.mxu0 0.0
        %928 = vmatpush.msra.mxu0 0.0
        %929 = vmatpush.msra.mxu0 0.0
        %930 = vmatpush.msra.mxu0 0.0
        %931 = vmatpush.msra.mxu0 %v894
        %932 = vmatmul.f32.gmra.mxu0 %v890
        %v933 = vpop.f32.mrf.mxu0
        %v934 = vadd.f32 %v882, %v933
        %935 = vdwg.mxu0
        %v936 = vld [vmem:[#allocation2] sm:$0xff]
        %v937 = vld [vmem:[#allocation2 + $0x8] sm:$0xff]
        %v938 = vld [vmem:[#allocation2 + $0x10] sm:$0xff]
        %v939 = vld [vmem:[#allocation2 + $0x18] sm:$0xff]
        %v940 = vld [vmem:[#allocation2 + $0x20] sm:$0xff]
        %v941 = vld [vmem:[#allocation2 + $0x28] sm:$0xff]
        %v942 = vld [vmem:[#allocation2 + $0x30] sm:$0xff]
        %v943 = vld [vmem:[#allocation2 + $0x38] sm:$0xff]
        %v944 = vld [vmem:[#allocation2 + $0x40] sm:$0xff]
        %v945 = vld [vmem:[#allocation2 + $0x48] sm:$0xff]
        %v946 = vld [vmem:[#allocation2 + $0x50] sm:$0xff]
        %v947 = vld [vmem:[#allocation2 + $0x58] sm:$0xff]
        %v948 = vld [vmem:[#allocation2 + $0x60] sm:$0xff]
        %v949 = vld [vmem:[#allocation2 + $0x68] sm:$0xff]
        %v950 = vld [vmem:[#allocation2 + $0x70] sm:$0xff]
        %v951 = vld [vmem:[#allocation2 + $0x78] sm:$0xff]
        %v952 = vld [vmem:[#allocation2 + $0x80] sm:$0xff]
        %v953 = vld [vmem:[#allocation2 + $0x88] sm:$0xff]
        %v954 = vld [vmem:[#allocation2 + $0x90] sm:$0xff]
        %v955 = vld [vmem:[#allocation2 + $0x98] sm:$0xff]
        %v956 = vld [vmem:[#allocation2 + $0xa0] sm:$0xff]
        %v957 = vld [vmem:[#allocation2 + $0xa8] sm:$0xff]
        %v958 = vld [vmem:[#allocation2 + $0xb0] sm:$0xff]
        %v959 = vld [vmem:[#allocation2 + $0xb8] sm:$0xff]
        %v960 = vld [vmem:[#allocation2 + $0xc0] sm:$0xff]
        %v961 = vld [vmem:[#allocation2 + $0xc8] sm:$0xff]
        %v962 = vld [vmem:[#allocation2 + $0xd0] sm:$0xff]
        %v963 = vld [vmem:[#allocation2 + $0xd8] sm:$0xff]
        %v964 = vld [vmem:[#allocation2 + $0xe0] sm:$0xff]
        %v965 = vld [vmem:[#allocation2 + $0xe8] sm:$0xff]
        %v966 = vld [vmem:[#allocation2 + $0xf0] sm:$0xff]
        %v967 = vld [vmem:[#allocation2 + $0xf8] sm:$0xff]
        %v968 = vld [vmem:[#allocation2 + $0x100] sm:$0xff]
        %v969 = vld [vmem:[#allocation2 + $0x108] sm:$0xff]
        %v970 = vld [vmem:[#allocation2 + $0x110] sm:$0xff]
        %v971 = vld [vmem:[#allocation2 + $0x118] sm:$0xff]
        %v972 = vld [vmem:[#allocation2 + $0x120] sm:$0xff]
        %v973 = vld [vmem:[#allocation2 + $0x128] sm:$0xff]
        %v974 = vld [vmem:[#allocation2 + $0x130] sm:$0xff]
        %v975 = vld [vmem:[#allocation2 + $0x138] sm:$0xff]
        %v976 = vld [vmem:[#allocation2 + $0x140] sm:$0xff]
        %v977 = vld [vmem:[#allocation2 + $0x148] sm:$0xff]
        %v978 = vld [vmem:[#allocation2 + $0x150] sm:$0xff]
        %v979 = vld [vmem:[#allocation2 + $0x158] sm:$0xff]
        %v980 = vld [vmem:[#allocation2 + $0x160] sm:$0xff]
        %v981 = vld [vmem:[#allocation2 + $0x168] sm:$0xff]
        %v982 = vld [vmem:[#allocation2 + $0x170] sm:$0xff]
        %v983 = vld [vmem:[#allocation2 + $0x178] sm:$0xff]
        %v984 = vld [vmem:[#allocation2 + $0x180] sm:$0xff]
        %v985 = vld [vmem:[#allocation2 + $0x188] sm:$0xff]
        %v986 = vld [vmem:[#allocation2 + $0x190] sm:$0xff]
        %v987 = vld [vmem:[#allocation2 + $0x198] sm:$0xff]
        %v988 = vld [vmem:[#allocation2 + $0x1a0] sm:$0xff]
        %v989 = vld [vmem:[#allocation2 + $0x1a8] sm:$0xff]
        %v990 = vld [vmem:[#allocation2 + $0x1b0] sm:$0xff]
        %v991 = vld [vmem:[#allocation2 + $0x1b8] sm:$0xff]
        %v992 = vld [vmem:[#allocation2 + $0x1c0] sm:$0xff]
        %v993 = vld [vmem:[#allocation2 + $0x1c8] sm:$0xff]
        %v994 = vld [vmem:[#allocation2 + $0x1d0] sm:$0xff]
        %v995 = vld [vmem:[#allocation2 + $0x1d8] sm:$0xff]
        %v996 = vld [vmem:[#allocation2 + $0x1e0] sm:$0xff]
        %v997 = vld [vmem:[#allocation2 + $0x1e8] sm:$0xff]
        %v998 = vld [vmem:[#allocation2 + $0x1f0] sm:$0xff]
        %v999 = vld [vmem:[#allocation2 + $0x1f8] sm:$0xff]
        %1000 = vmatpush.msra.mxu0 %v966
        %1001 = vmatpush.msra.mxu0 %v964
        %1002 = vmatpush.msra.mxu0 %v962
        %1003 = vmatpush.msra.mxu0 %v960
        %1004 = vmatpush.msra.mxu0 %v958
        %1005 = vmatpush.msra.mxu0 %v956
        %1006 = vmatpush.msra.mxu0 %v954
        %1007 = vmatpush.msra.mxu0 %v952
        %1008 = vmatpush.msra.mxu0 %v950
        %1009 = vmatpush.msra.mxu0 %v948
        %1010 = vmatpush.msra.mxu0 %v946
        %1011 = vmatpush.msra.mxu0 %v944
        %1012 = vmatpush.msra.mxu0 %v942
        %1013 = vmatpush.msra.mxu0 %v940
        %1014 = vmatpush.msra.mxu0 %v938
        %1015 = vmatpush.msra.mxu0 %v936
        %1016 = vmatmul.f32.gmra.mxu0 %v878
        %v1017 = vpop.f32.mrf.mxu0
        %v1018 = vadd.f32 0.0, %v1017
        %1019 = vdwg.mxu0
        %1020 = vmatpush.msra.mxu0 %v998
        %1021 = vmatpush.msra.mxu0 %v996
        %1022 = vmatpush.msra.mxu0 %v994
        %1023 = vmatpush.msra.mxu0 %v992
        %1024 = vmatpush.msra.mxu0 %v990
        %1025 = vmatpush.msra.mxu0 %v988
        %1026 = vmatpush.msra.mxu0 %v986
        %1027 = vmatpush.msra.mxu0 %v984
        %1028 = vmatpush.msra.mxu0 %v982
        %1029 = vmatpush.msra.mxu0 %v980
        %1030 = vmatpush.msra.mxu0 %v978
        %1031 = vmatpush.msra.mxu0 %v976
        %1032 = vmatpush.msra.mxu0 %v974
        %1033 = vmatpush.msra.mxu0 %v972
        %1034 = vmatpush.msra.mxu0 %v970
        %1035 = vmatpush.msra.mxu0 %v968
        %1036 = vmatmul.f32.gmra.mxu0 %v879
        %v1037 = vpop.f32.mrf.mxu0
        %v1038 = vadd.f32 %v1018, %v1037
        %1039 = vdwg.mxu0
        %1040 = vmatpush.msra.mxu0 %v967
        %1041 = vmatpush.msra.mxu0 %v965
        %1042 = vmatpush.msra.mxu0 %v963
        %1043 = vmatpush.msra.mxu0 %v961
        %1044 = vmatpush.msra.mxu0 %v959
        %1045 = vmatpush.msra.mxu0 %v957
        %1046 = vmatpush.msra.mxu0 %v955
        %1047 = vmatpush.msra.mxu0 %v953
        %1048 = vmatpush.msra.mxu0 %v951
        %1049 = vmatpush.msra.mxu0 %v949
        %1050 = vmatpush.msra.mxu0 %v947
        %1051 = vmatpush.msra.mxu0 %v945
        %1052 = vmatpush.msra.mxu0 %v943
        %1053 = vmatpush.msra.mxu0 %v941
        %1054 = vmatpush.msra.mxu0 %v939
        %1055 = vmatpush.msra.mxu0 %v937
        %1056 = vmatmul.f32.gmra.mxu0 %v878
        %v1057 = vpop.f32.mrf.mxu0
        %v1058 = vadd.f32 0.0, %v1057
        %1059 = vdwg.mxu0
        %1060 = vmatpush.msra.mxu0 %v999
        %1061 = vmatpush.msra.mxu0 %v997
        %1062 = vmatpush.msra.mxu0 %v995
        %1063 = vmatpush.msra.mxu0 %v993
        %1064 = vmatpush.msra.mxu0 %v991
        %1065 = vmatpush.msra.mxu0 %v989
        %1066 = vmatpush.msra.mxu0 %v987
        %1067 = vmatpush.msra.mxu0 %v985
        %1068 = vmatpush.msra.mxu0 %v983
        %1069 = vmatpush.msra.mxu0 %v981
        %1070 = vmatpush.msra.mxu0 %v979
        %1071 = vmatpush.msra.mxu0 %v977
        %1072 = vmatpush.msra.mxu0 %v975
        %1073 = vmatpush.msra.mxu0 %v973
        %1074 = vmatpush.msra.mxu0 %v971
        %1075 = vmatpush.msra.mxu0 %v969
        %1076 = vmatmul.f32.gmra.mxu0 %v879
        %v1077 = vpop.f32.mrf.mxu0
        %v1078 = vadd.f32 %v1058, %v1077
        %1079 = vdwg.mxu0
        %1080 = vmatpush.msra.mxu0 %v966
        %1081 = vmatpush.msra.mxu0 %v964
        %1082 = vmatpush.msra.mxu0 %v962
        %1083 = vmatpush.msra.mxu0 %v960
        %1084 = vmatpush.msra.mxu0 %v958
        %1085 = vmatpush.msra.mxu0 %v956
        %1086 = vmatpush.msra.mxu0 %v954
        %1087 = vmatpush.msra.mxu0 %v952
        %1088 = vmatpush.msra.mxu0 %v950
        %1089 = vmatpush.msra.mxu0 %v948
        %1090 = vmatpush.msra.mxu0 %v946
        %1091 = vmatpush.msra.mxu0 %v944
        %1092 = vmatpush.msra.mxu0 %v942
        %1093 = vmatpush.msra.mxu0 %v940
        %1094 = vmatpush.msra.mxu0 %v938
        %1095 = vmatpush.msra.mxu0 %v936
        %1096 = vmatmul.f32.gmra.mxu0 %v914
        %v1097 = vpop.f32.mrf.mxu0
        %v1098 = vadd.f32 0.0, %v1097
        %1099 = vdwg.mxu0
        %1100 = vmatpush.msra.mxu0 %v998
        %1101 = vmatpush.msra.mxu0 %v996
        %1102 = vmatpush.msra.mxu0 %v994
        %1103 = vmatpush.msra.mxu0 %v992
        %1104 = vmatpush.msra.mxu0 %v990
        %1105 = vmatpush.msra.mxu0 %v988
        %1106 = vmatpush.msra.mxu0 %v986
        %1107 = vmatpush.msra.mxu0 %v984
        %1108 = vmatpush.msra.mxu0 %v982
        %1109 = vmatpush.msra.mxu0 %v980
        %1110 = vmatpush.msra.mxu0 %v978
        %1111 = vmatpush.msra.mxu0 %v976
        %1112 = vmatpush.msra.mxu0 %v974
        %1113 = vmatpush.msra.mxu0 %v972
        %1114 = vmatpush.msra.mxu0 %v970
        %1115 = vmatpush.msra.mxu0 %v968
        %1116 = vmatmul.f32.gmra.mxu0 %v934
        %v1117 = vpop.f32.mrf.mxu0
        %v1118 = vadd.f32 %v1098, %v1117
        %1119 = vdwg.mxu0
        %1120 = vmatpush.msra.mxu0 %v967
        %1121 = vmatpush.msra.mxu0 %v965
        %1122 = vmatpush.msra.mxu0 %v963
        %1123 = vmatpush.msra.mxu0 %v961
        %1124 = vmatpush.msra.mxu0 %v959
        %1125 = vmatpush.msra.mxu0 %v957
        %1126 = vmatpush.msra.mxu0 %v955
        %1127 = vmatpush.msra.mxu0 %v953
        %1128 = vmatpush.msra.mxu0 %v951
        %1129 = vmatpush.msra.mxu0 %v949
        %1130 = vmatpush.msra.mxu0 %v947
        %1131 = vmatpush.msra.mxu0 %v945
        %1132 = vmatpush.msra.mxu0 %v943
        %1133 = vmatpush.msra.mxu0 %v941
        %1134 = vmatpush.msra.mxu0 %v939
        %1135 = vmatpush.msra.mxu0 %v937
        %1136 = vmatmul.f32.gmra.mxu0 %v914
        %v1137 = vpop.f32.mrf.mxu0
        %v1138 = vadd.f32 0.0, %v1137
        %1139 = vdwg.mxu0
        %1140 = vmatpush.msra.mxu0 %v999
        %1141 = vmatpush.msra.mxu0 %v997
        %1142 = vmatpush.msra.mxu0 %v995
        %1143 = vmatpush.msra.mxu0 %v993
        %1144 = vmatpush.msra.mxu0 %v991
        %1145 = vmatpush.msra.mxu0 %v989
        %1146 = vmatpush.msra.mxu0 %v987
        %1147 = vmatpush.msra.mxu0 %v985
        %1148 = vmatpush.msra.mxu0 %v983
        %1149 = vmatpush.msra.mxu0 %v981
        %1150 = vmatpush.msra.mxu0 %v979
        %1151 = vmatpush.msra.mxu0 %v977
        %1152 = vmatpush.msra.mxu0 %v975
        %1153 = vmatpush.msra.mxu0 %v973
        %1154 = vmatpush.msra.mxu0 %v971
        %1155 = vmatpush.msra.mxu0 %v969
        %1156 = vmatmul.f32.gmra.mxu0 %v934
        %v1157 = vpop.f32.mrf.mxu0
        %v1158 = vadd.f32 %v1138, %v1157
        %1159 = vdwg.mxu0
        %1161 = vrot.lane.b32.xlu0 %v1038, 64
        %v1162 = vpop.permute.xlu0 %1161
        %1165 = vrot.lane.b32.xlu0 %v1078, 64
        %v1166 = vpop.permute.xlu0 %1165
        %1169 = vrot.lane.b32.xlu0 %v1118, 64
        %v1170 = vpop.permute.xlu0 %1169
        %1173 = vrot.lane.b32.xlu0 %v1158, 64
        %v1174 = vpop.permute.xlu0 %1173
        %1176 = vrot.lane.b32.xlu0 %v1038, 73
        %v1177 = vpop.permute.xlu0 %1176
        %1178 = vrot.lane.b32.xlu0 %v1162, 73
        %v1179 = vpop.permute.xlu0 %1178
        %1180 = vrot.lane.b32.xlu0 %v1078, 73
        %v1181 = vpop.permute.xlu0 %1180
        %1182 = vrot.lane.b32.xlu0 %v1166, 73
        %v1183 = vpop.permute.xlu0 %1182
        %1188 = vrot.lane.b32.xlu0 %v1038, 9
        %v1189 = vpop.permute.xlu0 %1188
        %1190 = vrot.lane.b32.xlu0 %v1162, 9
        %v1191 = vpop.permute.xlu0 %1190
        %1192 = vrot.lane.b32.xlu0 %v1078, 9
        %v1193 = vpop.permute.xlu0 %1192
        %1194 = vrot.lane.b32.xlu0 %v1166, 9
        %v1195 = vpop.permute.xlu0 %1194
        %vm1200 = vcmask 72704
        %v1201 = vsel %vm1200, %v1177, %v1189
        %v1202 = vsel %vm1200, %v1179, %v1191
        %v1203 = vsel %vm1200, %v1181, %v1193
        %v1204 = vsel %vm1200, %v1183, %v1195
        %v1205 = vld [vmem:[#allocation4] sm:$0x1]
        %v1206 = vperm.slane %v1205, 0
        %v1207 = vmul.f32 %v1201, %v1206
        %v1208 = vmul.f32 %v1202, %v1206
        %v1209 = vmul.f32 %v1203, %v1206
        %v1210 = vmul.f32 %v1204, %v1206
        %1211 = vrot.lane.b32.xlu0 %v1038, 72
        %v1212 = vpop.permute.xlu0 %1211
        %1213 = vrot.lane.b32.xlu0 %v1162, 72
        %v1214 = vpop.permute.xlu0 %1213
        %1215 = vrot.lane.b32.xlu0 %v1078, 72
        %v1216 = vpop.permute.xlu0 %1215
        %1217 = vrot.lane.b32.xlu0 %v1166, 72
        %v1218 = vpop.permute.xlu0 %1217
        %1223 = vrot.lane.b32.xlu0 %v1038, 8
        %v1224 = vpop.permute.xlu0 %1223
        %1225 = vrot.lane.b32.xlu0 %v1162, 8
        %v1226 = vpop.permute.xlu0 %1225
        %1227 = vrot.lane.b32.xlu0 %v1078, 8
        %v1228 = vpop.permute.xlu0 %1227
        %1229 = vrot.lane.b32.xlu0 %v1166, 8
        %v1230 = vpop.permute.xlu0 %1229
        %vm1235 = vcmask 64512
        %v1236 = vsel %vm1235, %v1212, %v1224
        %v1237 = vsel %vm1235, %v1214, %v1226
        %v1238 = vsel %vm1235, %v1216, %v1228
        %v1239 = vsel %vm1235, %v1218, %v1230
        %v1240 = vld [vmem:[#allocation4 + $0x1] sm:$0x1]
        %v1241 = vperm.slane %v1240, 0
        %v1242 = vmul.f32 %v1236, %v1241
        %v1243 = vmul.f32 %v1237, %v1241
        %v1244 = vmul.f32 %v1238, %v1241
        %v1245 = vmul.f32 %v1239, %v1241
        %1246 = vrot.lane.b32.xlu0 %v1038, 71
        %v1247 = vpop.permute.xlu0 %1246
        %1248 = vrot.lane.b32.xlu0 %v1162, 71
        %v1249 = vpop.permute.xlu0 %1248
        %1250 = vrot.lane.b32.xlu0 %v1078, 71
        %v1251 = vpop.permute.xlu0 %1250
        %1252 = vrot.lane.b32.xlu0 %v1166, 71
        %v1253 = vpop.permute.xlu0 %1252
        %1258 = vrot.lane.b32.xlu0 %v1038, 7
        %v1259 = vpop.permute.xlu0 %1258
        %1260 = vrot.lane.b32.xlu0 %v1162, 7
        %v1261 = vpop.permute.xlu0 %1260
        %1262 = vrot.lane.b32.xlu0 %v1078, 7
        %v1263 = vpop.permute.xlu0 %1262
        %1264 = vrot.lane.b32.xlu0 %v1166, 7
        %v1265 = vpop.permute.xlu0 %1264
        %vm1270 = vcmask 56320
        %v1271 = vsel %vm1270, %v1247, %v1259
        %v1272 = vsel %vm1270, %v1249, %v1261
        %v1273 = vsel %vm1270, %v1251, %v1263
        %v1274 = vsel %vm1270, %v1253, %v1265
        %v1275 = vld [vmem:[#allocation4 + $0x2] sm:$0x1]
        %v1276 = vperm.slane %v1275, 0
        %v1277 = vmul.f32 %v1271, %v1276
        %v1278 = vmul.f32 %v1272, %v1276
        %v1279 = vmul.f32 %v1273, %v1276
        %v1280 = vmul.f32 %v1274, %v1276
        %1281 = vrot.lane.b32.xlu0 %v1038, 65
        %v1282 = vpop.permute.xlu0 %1281
        %1283 = vrot.lane.b32.xlu0 %v1162, 65
        %v1284 = vpop.permute.xlu0 %1283
        %1285 = vrot.lane.b32.xlu0 %v1078, 65
        %v1286 = vpop.permute.xlu0 %1285
        %1287 = vrot.lane.b32.xlu0 %v1166, 65
        %v1288 = vpop.permute.xlu0 %1287
        %1293 = vrot.lane.b32.xlu0 %v1038, 1
        %v1294 = vpop.permute.xlu0 %1293
        %1295 = vrot.lane.b32.xlu0 %v1162, 1
        %v1296 = vpop.permute.xlu0 %1295
        %1297 = vrot.lane.b32.xlu0 %v1078, 1
        %v1298 = vpop.permute.xlu0 %1297
        %1299 = vrot.lane.b32.xlu0 %v1166, 1
        %v1300 = vpop.permute.xlu0 %1299
        %v1305 = vsel %vm432, %v1282, %v1294
        %v1306 = vsel %vm432, %v1284, %v1296
        %v1307 = vsel %vm432, %v1286, %v1298
        %v1308 = vsel %vm432, %v1288, %v1300
        %v1309 = vld [vmem:[#allocation4 + $0x3] sm:$0x1]
        %v1310 = vperm.slane %v1309, 0
        %v1311 = vmul.f32 %v1305, %v1310
        %v1312 = vmul.f32 %v1306, %v1310
        %v1313 = vmul.f32 %v1307, %v1310
        %v1314 = vmul.f32 %v1308, %v1310
        %1315 = vrot.lane.b32.xlu0 %v1038, 127
        %v1316 = vpop.permute.xlu0 %1315
        %1317 = vrot.lane.b32.xlu0 %v1162, 127
        %v1318 = vpop.permute.xlu0 %1317
        %1319 = vrot.lane.b32.xlu0 %v1078, 127
        %v1320 = vpop.permute.xlu0 %1319
        %1321 = vrot.lane.b32.xlu0 %v1166, 127
        %v1322 = vpop.permute.xlu0 %1321
        %1327 = vrot.lane.b32.xlu0 %v1038, 63
        %v1328 = vpop.permute.xlu0 %1327
        %1329 = vrot.lane.b32.xlu0 %v1162, 63
        %v1330 = vpop.permute.xlu0 %1329
        %1331 = vrot.lane.b32.xlu0 %v1078, 63
        %v1332 = vpop.permute.xlu0 %1331
        %1333 = vrot.lane.b32.xlu0 %v1166, 63
        %v1334 = vpop.permute.xlu0 %1333
        %vm1339 = vcmask 515072
        %v1340 = vsel %vm1339, %v1316, %v1328
        %v1341 = vsel %vm1339, %v1318, %v1330
        %v1342 = vsel %vm1339, %v1320, %v1332
        %v1343 = vsel %vm1339, %v1322, %v1334
        %v1344 = vld [vmem:[#allocation4 + $0x5] sm:$0x1]
        %v1345 = vperm.slane %v1344, 0
        %v1346 = vmul.f32 %v1340, %v1345
        %v1347 = vmul.f32 %v1341, %v1345
        %v1348 = vmul.f32 %v1342, %v1345
        %v1349 = vmul.f32 %v1343, %v1345
        %1350 = vrot.lane.b32.xlu0 %v1038, 121
        %v1351 = vpop.permute.xlu0 %1350
        %1352 = vrot.lane.b32.xlu0 %v1162, 121
        %v1353 = vpop.permute.xlu0 %1352
        %1354 = vrot.lane.b32.xlu0 %v1078, 121
        %v1355 = vpop.permute.xlu0 %1354
        %1356 = vrot.lane.b32.xlu0 %v1166, 121
        %v1357 = vpop.permute.xlu0 %1356
        %1362 = vrot.lane.b32.xlu0 %v1038, 57
        %v1363 = vpop.permute.xlu0 %1362
        %1364 = vrot.lane.b32.xlu0 %v1162, 57
        %v1365 = vpop.permute.xlu0 %1364
        %1366 = vrot.lane.b32.xlu0 %v1078, 57
        %v1367 = vpop.permute.xlu0 %1366
        %1368 = vrot.lane.b32.xlu0 %v1166, 57
        %v1369 = vpop.permute.xlu0 %1368
        %vm1374 = vcmask 465920
        %v1375 = vsel %vm1374, %v1351, %v1363
        %v1376 = vsel %vm1374, %v1353, %v1365
        %v1377 = vsel %vm1374, %v1355, %v1367
        %v1378 = vsel %vm1374, %v1357, %v1369
        %v1379 = vld [vmem:[#allocation4 + $0x6] sm:$0x1]
        %v1380 = vperm.slane %v1379, 0
        %v1381 = vmul.f32 %v1375, %v1380
        %v1382 = vmul.f32 %v1376, %v1380
        %v1383 = vmul.f32 %v1377, %v1380
        %v1384 = vmul.f32 %v1378, %v1380
        %1385 = vrot.lane.b32.xlu0 %v1038, 120
        %v1386 = vpop.permute.xlu0 %1385
        %1387 = vrot.lane.b32.xlu0 %v1162, 120
        %v1388 = vpop.permute.xlu0 %1387
        %1389 = vrot.lane.b32.xlu0 %v1078, 120
        %v1390 = vpop.permute.xlu0 %1389
        %1391 = vrot.lane.b32.xlu0 %v1166, 120
        %v1392 = vpop.permute.xlu0 %1391
        %1397 = vrot.lane.b32.xlu0 %v1038, 56
        %v1398 = vpop.permute.xlu0 %1397
        %1399 = vrot.lane.b32.xlu0 %v1162, 56
        %v1400 = vpop.permute.xlu0 %1399
        %1401 = vrot.lane.b32.xlu0 %v1078, 56
        %v1402 = vpop.permute.xlu0 %1401
        %1403 = vrot.lane.b32.xlu0 %v1166, 56
        %v1404 = vpop.permute.xlu0 %1403
        %vm1409 = vcmask 457728
        %v1410 = vsel %vm1409, %v1386, %v1398
        %v1411 = vsel %vm1409, %v1388, %v1400
        %v1412 = vsel %vm1409, %v1390, %v1402
        %v1413 = vsel %vm1409, %v1392, %v1404
        %v1414 = vld [vmem:[#allocation4 + $0x7] sm:$0x1]
        %v1415 = vperm.slane %v1414, 0
        %v1416 = vmul.f32 %v1410, %v1415
        %v1417 = vmul.f32 %v1411, %v1415
        %v1418 = vmul.f32 %v1412, %v1415
        %v1419 = vmul.f32 %v1413, %v1415
        %1420 = vrot.lane.b32.xlu0 %v1038, 119
        %v1421 = vpop.permute.xlu0 %1420
        %1422 = vrot.lane.b32.xlu0 %v1162, 119
        %v1423 = vpop.permute.xlu0 %1422
        %1424 = vrot.lane.b32.xlu0 %v1078, 119
        %v1425 = vpop.permute.xlu0 %1424
        %1426 = vrot.lane.b32.xlu0 %v1166, 119
        %v1427 = vpop.permute.xlu0 %1426
        %1432 = vrot.lane.b32.xlu0 %v1038, 55
        %v1433 = vpop.permute.xlu0 %1432
        %1434 = vrot.lane.b32.xlu0 %v1162, 55
        %v1435 = vpop.permute.xlu0 %1434
        %1436 = vrot.lane.b32.xlu0 %v1078, 55
        %v1437 = vpop.permute.xlu0 %1436
        %1438 = vrot.lane.b32.xlu0 %v1166, 55
        %v1439 = vpop.permute.xlu0 %1438
        %vm1444 = vcmask 449536
        %v1445 = vsel %vm1444, %v1421, %v1433
        %v1446 = vsel %vm1444, %v1423, %v1435
        %v1447 = vsel %vm1444, %v1425, %v1437
        %v1448 = vsel %vm1444, %v1427, %v1439
        %v1449 = vld [vmem:[#allocation4 + $0x8] sm:$0x1]
        %v1450 = vperm.slane %v1449, 0
        %v1451 = vmul.f32 %v1445, %v1450
        %v1452 = vmul.f32 %v1446, %v1450
        %v1453 = vmul.f32 %v1447, %v1450
        %v1454 = vmul.f32 %v1448, %v1450
        %v1455 = vld [vmem:[#allocation7] sm:$0xff]
        %v1456 = vld [vmem:[#allocation7 + $0x8] sm:$0xff]
        %v1457 = vld [vmem:[#allocation7 + $0x10] sm:$0xff]
        %1458 = vset.pattern.permute.xlu0 15
        %1459 = vperm.xlu0 %1458, %v314
        %v1460 = vpop.permute.xlu0 %1459
        %vm1462 = vcmask 523264
        %v1464 = vsel %vm1462, %v1457, 0
        %1466 = vmatpush.msra.mxu0 %v1314
        %1467 = vmatpush.msra.mxu0 %v1313
        %1468 = vmatpush.msra.mxu0 %v1312
        %1469 = vmatpush.msra.mxu0 %v1311
        %1470 = vmatpush.msra.mxu0 %v1280
        %1471 = vmatpush.msra.mxu0 %v1279
        %1472 = vmatpush.msra.mxu0 %v1278
        %1473 = vmatpush.msra.mxu0 %v1277
        %1474 = vmatpush.msra.mxu0 %v1245
        %1475 = vmatpush.msra.mxu0 %v1244
        %1476 = vmatpush.msra.mxu0 %v1243
        %1477 = vmatpush.msra.mxu0 %v1242
        %1478 = vmatpush.msra.mxu0 %v1210
        %1479 = vmatpush.msra.mxu0 %v1209
        %1480 = vmatpush.msra.mxu0 %v1208
        %1481 = vmatpush.msra.mxu0 %v1207
        %1482 = vmatmul.f32.gmra.mxu0 %v1455
        %v1483 = vpop.f32.mrf.mxu0
        %v1484 = vadd.f32 %v1460, %v1483
        %1485 = vdwg.mxu0
        %1486 = vmatpush.msra.mxu0 %v1419
        %1487 = vmatpush.msra.mxu0 %v1418
        %1488 = vmatpush.msra.mxu0 %v1417
        %1489 = vmatpush.msra.mxu0 %v1416
        %1490 = vmatpush.msra.mxu0 %v1384
        %1491 = vmatpush.msra.mxu0 %v1383
        %1492 = vmatpush.msra.mxu0 %v1382
        %1493 = vmatpush.msra.mxu0 %v1381
        %1494 = vmatpush.msra.mxu0 %v1349
        %1495 = vmatpush.msra.mxu0 %v1348
        %1496 = vmatpush.msra.mxu0 %v1347
        %1497 = vmatpush.msra.mxu0 %v1346
        %1498 = vmatpush.msra.mxu0 %v1166
        %1499 = vmatpush.msra.mxu0 %v1078
        %1500 = vmatpush.msra.mxu0 %v1162
        %1501 = vmatpush.msra.mxu0 %v1038
        %1502 = vmatmul.f32.gmra.mxu0 %v1456
        %v1503 = vpop.f32.mrf.mxu0
        %v1504 = vadd.f32 %v1484, %v1503
        %1505 = vdwg.mxu0
        %1506 = vmatpush.msra.mxu0 0.0
        %1507 = vmatpush.msra.mxu0 0.0
        %1508 = vmatpush.msra.mxu0 0.0
        %1509 = vmatpush.msra.mxu0 0.0
        %1510 = vmatpush.msra.mxu0 0.0
        %1511 = vmatpush.msra.mxu0 0.0
        %1512 = vmatpush.msra.mxu0 0.0
        %1513 = vmatpush.msra.mxu0 0.0
        %1514 = vmatpush.msra.mxu0 %v1174
        %1515 = vmatpush.msra.mxu0 %v1158
        %1516 = vmatpush.msra.mxu0 %v1170
        %1517 = vmatpush.msra.mxu0 %v1118
        %1518 = vmatpush.msra.mxu0 %v1454
        %1519 = vmatpush.msra.mxu0 %v1453
        %1520 = vmatpush.msra.mxu0 %v1452
        %1521 = vmatpush.msra.mxu0 %v1451
        %1522 = vmatmul.f32.gmra.mxu0 %v1464
        %v1523 = vpop.f32.mrf.mxu0
        %v1524 = vadd.f32 %v1504, %v1523
        %1525 = vdwg.mxu0
        %v1527 = vrot.slane %v1524, 1
        %1528 = vrot.lane.b32.xlu0 %v1527, 64
        %v1529 = vpop.permute.xlu0 %1528
        %v1531 = vrot.slane %v1524, 2
        %v1533 = vrot.slane %v1524, 3
        %1534 = vrot.lane.b32.xlu0 %v1533, 64
        %v1535 = vpop.permute.xlu0 %1534
        %v1537 = vrot.slane %v1524, 4
        %v1539 = vrot.slane %v1524, 5
        %1540 = vrot.lane.b32.xlu0 %v1539, 64
        %v1541 = vpop.permute.xlu0 %1540
        %v1543 = vrot.slane %v1524, 6
        %v1545 = vrot.slane %v1524, 7
        %1546 = vrot.lane.b32.xlu0 %v1545, 64
        %v1547 = vpop.permute.xlu0 %1546
        %v1549 = vsel %vm1462, %v1524, %v1529
        %v1550 = vsel %vm1462, %v1531, %v1535
        %v1551 = vsel %vm1462, %v1537, %v1541
        %v1552 = vsel %vm1462, %v1543, %v1547
        %v1557 = vrot.slane %v1550, 7
        %v1558 = vrot.slane %v1551, 6
        %v1559 = vrot.slane %v1552, 5
        %vm1560 = vcmask 1040384
        %v1561 = vsel %vm1560, %v1549, %v1557
        %vm1562 = vcmask 1042434
        %v1563 = vsel %vm1562, %v1558, %v1559
        %vm1564 = vcmask 1041408
        %v1565 = vsel %vm1564, %v1561, %v1563
        %v1567 = vlaneseq
        %vm1568 = vcmp.ge.s32.totalorder %v1567, 0
        %vm1569 = vcmp.lt.s32.totalorder %v1567, 512
        %vm1570 = vmand %vm1568, %vm1569
        %1571 = vst.msk [vmem:[%s312] sm:$0xf] %vm1570, %v1565
        %p1572 = scmp.lt.s32.totalorder %s20, 1
        %s1573 = scalar_select %p1572, %s20, 1
        %s1574 = smul.addr %s1573, 4
        %s1575 = scalar_lea.vmem %s6, %s1574
        // Predicated region
        $region61: #{downsample_block_forward.1} parent=43 // pred_check
          %p1576 = pneg %p169
        $region62: #{downsample_block_forward.1} parent=43 // pred_check_branch
          %1578 = sbr.rel (%p1576) target = $region64
        $region63: #{downsample_block_forward.1} parent=43 // pred_region
          _
        $region64: #{downsample_block_forward.1} parent=43 // pred_fallthru
          _
      $region44: #{downsample_block_forward.1} parent=5 // pred_fallthru
        _
      %p1579 = scmp.le.s32.totalorder 2, %s15
      // Predicated region
      $region65: #{downsample_block_forward.1} parent=5 // pred_check
        %p1580 = pneg %p1579
      $region66: #{downsample_block_forward.1} parent=5 // pred_check_branch
        %1582 = sbr.rel (%p1580) target = $region68
      $region67: #{downsample_block_forward.1} parent=5 // pred_region
        %s1583 = ssub.s32 %s15, 2
        // Predicated region
        $region69: #{downsample_block_forward.1} parent=67 // pred_check
          %p1584 = pneg %p175
        $region70: #{downsample_block_forward.1} parent=67 // pred_check_branch
          %1586 = sbr.rel (%p1584) target = $region72
        $region71: #{downsample_block_forward.1} parent=67 // pred_region
          %p1587 = scmp.lt.s32.totalorder %s21, 1
          %s1588 = scalar_select %p1587, %s21, 1
          %s1589 = smul.addr %s1588, 4
          %s1590 = scalar_lea.vmem %s6, %s1589
        $region72: #{downsample_block_forward.1} parent=67 // pred_fallthru
          _
      $region68: #{downsample_block_forward.1} parent=5 // pred_fallthru
        _
    $region6: #{downsample_block_forward.1} parent=1 // loop_footer
      %s19 = sadd.s32 1, %s15
    $region7: #{downsample_block_forward.1} parent=1 // loop_footer_branch
      %14 = sbr.rel target = $region3
    $region8: #{downsample_block_forward.1} parent=1 // loop_exit
      _
    %1591 = vsyncpa [#allocation3], 1
    %s1592 = scalar_lea.sflag [#allocation3], 1
    %1593 = vsyncpa %s1592, 1
    %1594 = vsyncpa [#allocation5], 1
    %1595 = vsyncpa [#allocation8], 1

</llo_original>
